<compile_context>
chip_gen: v7x
topology: tpu7x:2x2x1
jax: 0.10.0
libtpu: 0.0.40
codegen_flags: <defaults>
</compile_context>

<pallas_src>
import jax
import jax.numpy as jnp
from jax import lax
from jax.experimental import pallas as pl
from jax.experimental.pallas import tpu as pltpu


# Kernel gate-group order is [i, f, o, g]; PyTorch LSTM parameter order is [i, f, g, o].
_GATE_PERM = (0, 1, 3, 2)   # target group -> source PyTorch gate block


def _make_kernel(T, B, E, G):
    """Build the fused bi-LSTM kernel for static (T, B, E, padded per-gate lane width G)."""

    def kernel(x_ref,        # (T*B, E)   bf16 time-major flattened embeddings
               w_in_ref,     # (E, 4G)    bf16 fused fwd+bwd input->gate weights (padded layout)
               b_ref,        # (1, 4G)    f32  fused bias (bih+bhh), fwd lanes [0:E], bwd [E:2E]
               whh_hi_ref,   # (G, 4G)    bf16 hi part of fused block-structured recurrent weights
               whh_lo_ref,   # (G, 4G)    bf16 lo part (whh - f32(hi))
               w1_ref,       # (G, H)     f32  Linear(2E->H); rows [0:2E] real, rest zero
               b1_ref,       # (1, H)
               w2_ref,       # (H, L)
               b2_ref,       # (1, L)
               out_ref):     # (B, L)
        # ---- one fused bf16 input projection for both directions & all T steps ----
        gin_all = jnp.dot(x_ref[...], w_in_ref[...],
                          preferred_element_type=jnp.float32)          # (T*B, 4G) f32

        # fwd lanes of each gate group: [k*G, k*G+E); bwd lanes: [k*G+E, k*G+2E); rest zero pad.
        lane = lax.broadcasted_iota(jnp.int32, (1, 4 * G), 1)
        is_fwd = (lane % G) < E

        bias = b_ref[...]                                               # (1, 4G)
        # Hoisted recombination (carry-independent => off the serial chain): step t combines the
        # fwd lanes of x[t] with the bwd lanes of x[T-1-t], plus the fused bias. Pad lanes stay 0.
        gin = []
        for t in range(T):
            fw = gin_all[t * B:(t + 1) * B, :]
            bw = gin_all[(T - 1 - t) * B:(T - t) * B, :]
            gin.append(jnp.where(is_fwd, fw, bw) + bias)

        whh_hi = whh_hi_ref[...]
        whh_lo = whh_lo_ref[...]

        # Fused carry lane layout: [h_fwd (E) | h_bwd (E) | zero pad (G-2E)]
        h = jnp.zeros((B, G), jnp.float32)
        c = jnp.zeros((B, G), jnp.float32)
        m = h

        # ---- fused, fully-unrolled recurrence (serial critical path) ----
        for t in range(T):
            if t == 0:
                gates = gin[0]                      # h == 0: recurrent term is exactly zero
            else:
                h_b = h.astype(jnp.bfloat16)
                # bf16 hi/lo split: 2 single-pass bf16 matmuls, whh kept at ~f32 precision.
                rec = (jnp.dot(h_b, whh_hi, preferred_element_type=jnp.float32)
                       + jnp.dot(h_b, whh_lo, preferred_element_type=jnp.float32))
                gates = gin[t] + rec
            # Gate groups ordered [i, f, o, g]: one contiguous sigmoid over lanes [0:3G].
            sig = jax.nn.sigmoid(gates[:, 0:3 * G])
            i_g = sig[:, 0 * G:1 * G]
            f_g = sig[:, 1 * G:2 * G]
            o_g = sig[:, 2 * G:3 * G]
            g_g = jnp.tanh(gates[:, 3 * G:4 * G])
            c = f_g * c + i_g * g_g
            h = o_g * jnp.tanh(c)
            m = h if t == 0 else jnp.maximum(m, h)   # running max seeded from first step's h

        # ---- MLP head (kept f32-exact): Linear(2E->H) -> ReLU -> Linear(H->L) -> softmax ----
        z1 = jnp.dot(m, w1_ref[...], preferred_element_type=jnp.float32) + b1_ref[...]
        z1 = jnp.maximum(z1, 0.0)
        logits = jnp.dot(z1, w2_ref[...], preferred_element_type=jnp.float32) + b2_ref[...]
        logits = logits - jnp.max(logits, axis=-1, keepdims=True)
        e = jnp.exp(logits)
        out_ref[...] = e / jnp.sum(e, axis=-1, keepdims=True)

    return kernel


def init_params(key, vocab_sizes, emb_sizes, hidden_dim, nlabels):
    """Deterministic uniform(-0.1, 0.1) init, mirroring uniform_initialization()."""
    emb_dim = sum(emb_sizes)

    def u(k, shape):
        return jax.random.uniform(k, shape, jnp.float32, -0.1, 0.1)

    keys = iter(jax.random.split(key, 32))
    params = {
        "emb": [u(next(keys), (v, e)) for v, e in zip(vocab_sizes, emb_sizes)],
        # PyTorch LSTM param shapes: w_ih (4H, in), w_hh (4H, H), biases (4H,) ; gate order i,f,g,o
        "wih_f": u(next(keys), (4 * emb_dim, emb_dim)),
        "whh_f": u(next(keys), (4 * emb_dim, emb_dim)),
        "bih_f": u(next(keys), (4 * emb_dim,)),
        "bhh_f": u(next(keys), (4 * emb_dim,)),
        "wih_b": u(next(keys), (4 * emb_dim, emb_dim)),
        "whh_b": u(next(keys), (4 * emb_dim, emb_dim)),
        "bih_b": u(next(keys), (4 * emb_dim,)),
        "bhh_b": u(next(keys), (4 * emb_dim,)),
        "w1": u(next(keys), (hidden_dim, 2 * emb_dim)),
        "b1": u(next(keys), (hidden_dim,)),
        "w2": u(next(keys), (nlabels, hidden_dim)),
        "b2": u(next(keys), (nlabels,)),
    }
    return params, emb_dim


def _pad_gate_cols(w_t, E, G, lane_off):
    """w_t: (K, 4E), PyTorch gate order [i,f,g,o] along axis 1.
    Returns (K, 4G) in kernel gate order [i,f,o,g], with each gate block placed at
    lanes [grp*G+lane_off, grp*G+lane_off+E)."""
    K = w_t.shape[0]
    out = jnp.zeros((K, 4 * G), jnp.float32)
    for grp, src in enumerate(_GATE_PERM):
        out = out.at[:, grp * G + lane_off:grp * G + lane_off + E].set(
            w_t[:, src * E:(src + 1) * E])
    return out


def _pad_gate_bias(b, E, G, lane_off):
    out = jnp.zeros((1, 4 * G), jnp.float32)
    for grp, src in enumerate(_GATE_PERM):
        out = out.at[0, grp * G + lane_off:grp * G + lane_off + E].set(
            b[src * E:(src + 1) * E])
    return out


def recurrent_rg_forward(inputs, params, emb_dim, hidden_dim, nlabels):
    # inputs: list of int32 arrays of shape (B, S), one per embedding table (JAX glue).
    embs = [jnp.take(w, idx, axis=0) for w, idx in zip(params["emb"], inputs)]
    x = jnp.concatenate(embs, axis=2)                 # (B, S, E)
    x = jnp.transpose(x, (1, 0, 2))                   # (S, B, E) time-major, as in PyTorch
    T, B, E = x.shape
    assert E == emb_dim
    x = x.reshape(T * B, E).astype(jnp.bfloat16)      # bf16 MXU operand

    G = ((2 * E + 127) // 128) * 128                  # padded per-gate lane width (>= 2E, 128-aligned)

    # Fused input-projection weights: fwd at lane offset 0, bwd at lane offset E of each group.
    w_in = (_pad_gate_cols(params["wih_f"].T, E, G, 0)
            + _pad_gate_cols(params["wih_b"].T, E, G, E)).astype(jnp.bfloat16)
    b_in = (_pad_gate_bias(params["bih_f"] + params["bhh_f"], E, G, 0)
            + _pad_gate_bias(params["bih_b"] + params["bhh_b"], E, G, E))

    # Fused block-structured recurrent weight: rows [0:E] act on h_fwd, rows [E:2E] on h_bwd.
    whh = jnp.zeros((G, 4 * G), jnp.float32)
    whh = whh.at[0:E, :].set(_pad_gate_cols(params["whh_f"].T, E, G, 0))
    whh = whh.at[E:2 * E, :].set(_pad_gate_cols(params["whh_b"].T, E, G, E))
    whh_hi = whh.astype(jnp.bfloat16)
    whh_lo = (whh - whh_hi.astype(jnp.float32)).astype(jnp.bfloat16)

    w1 = jnp.zeros((G, hidden_dim), jnp.float32).at[0:2 * E, :].set(params["w1"].T)
    b1 = params["b1"][None, :]                        # (1, H)
    w2 = params["w2"].T                               # (H, L)
    b2 = params["b2"][None, :]                        # (1, L)

    kernel = _make_kernel(T, B, E, G)
    vmem = pl.BlockSpec(memory_space=pltpu.MemorySpace.VMEM)
    out = pl.pallas_call(
        kernel,
        out_shape=jax.ShapeDtypeStruct((B, nlabels), jnp.float32),
        in_specs=[vmem] * 9,
        out_specs=vmem,
    )(x, w_in, b_in, whh_hi, whh_lo, w1, b1, w2, b2)
    return out


def reference_forward(inputs, params, emb_dim, hidden_dim, nlabels):
    """Pure-JAX reference reproducing the PyTorch forward exactly (f32 throughout)."""
    embs = [jnp.take(w, idx, axis=0) for w, idx in zip(params["emb"], inputs)]
    x = jnp.transpose(jnp.concatenate(embs, axis=2), (1, 0, 2))  # (T, B, E)
    T, B, E = x.shape

    def run_dir(wih, whh, b, xs):
        def step(carry, x_t):
            h, c = carry
            g = x_t @ wih.T + h @ whh.T + b
            i = jax.nn.sigmoid(g[:, 0:E])
            f = jax.nn.sigmoid(g[:, E:2 * E])
            gg = jnp.tanh(g[:, 2 * E:3 * E])
            o = jax.nn.sigmoid(g[:, 3 * E:4 * E])
            c = f * c + i * gg
            h = o * jnp.tanh(c)
            return (h, c), h
        init = (jnp.zeros((B, E)), jnp.zeros((B, E)))
        _, hs = lax.scan(step, init, xs)
        return hs

    h_fwd = run_dir(params["wih_f"], params["whh_f"],
                    params["bih_f"] + params["bhh_f"], x)
    h_bwd = run_dir(params["wih_b"], params["whh_b"],
                    params["bih_b"] + params["bhh_b"], x[::-1])[::-1]
    out_seq = jnp.concatenate([h_fwd, h_bwd], axis=-1)           # (T, B, 2E)
    feats = jnp.max(out_seq, axis=0)                             # (B, 2E)
    z1 = jnp.maximum(feats @ params["w1"].T + params["b1"], 0.0)
    logits = z1 @ params["w2"].T + params["b2"]
    return jax.nn.softmax(logits, axis=-1)


if __name__ == "__main__":
    vocab_sizes = (11, 7, 13)
    emb_sizes = (12, 10, 10)     # emb_dim = 32
    hidden_dim = 32
    nlabels = 8
    batch, seq = 2, 8

    key = jax.random.PRNGKey(0)
    pkey, *ikeys = jax.random.split(key, 1 + len(vocab_sizes))
    params, emb_dim = init_params(pkey, vocab_sizes, emb_sizes, hidden_dim, nlabels)

    inputs = [jax.random.randint(k, (batch, seq), 0, v, dtype=jnp.int32)
              for k, v in zip(ikeys, vocab_sizes)]

    out = recurrent_rg_forward(inputs, params, emb_dim, hidden_dim, nlabels)
    out = jax.block_until_ready(out)

    ref = reference_forward(inputs, params, emb_dim, hidden_dim, nlabels)
    assert out.shape == (batch, nlabels)
    assert jnp.allclose(out, ref, atol=1e-4, rtol=1e-4), "mismatch vs JAX reference"
    assert jnp.allclose(jnp.sum(out, axis=-1), 1.0, atol=1e-5)

    print("KERNEL_OK")
</pallas_src>

<mosaic_0001>
module attributes {stable_mosaic.version = 11 : i64} {
  func.func @kernel(%arg0: memref<16x32xbf16, #tpu.memory_space<vmem>>, %arg1: memref<32x512xbf16, #tpu.memory_space<vmem>>, %arg2: memref<1x512xf32, #tpu.memory_space<vmem>>, %arg3: memref<128x512xbf16, #tpu.memory_space<vmem>>, %arg4: memref<128x512xbf16, #tpu.memory_space<vmem>>, %arg5: memref<128x32xf32, #tpu.memory_space<vmem>>, %arg6: memref<1x32xf32, #tpu.memory_space<vmem>>, %arg7: memref<32x8xf32, #tpu.memory_space<vmem>>, %arg8: memref<1x8xf32, #tpu.memory_space<vmem>>, %arg9: memref<2x8xf32, #tpu.memory_space<vmem>>) attributes {dimension_semantics = [], scalar_prefetch = 0 : i64, scratch_operands = 0 : i64, tpu.core_type = #tpu.core_type<tc>} {
    %c0 = arith.constant 0 : index
    %c0_0 = arith.constant 0 : index
    %0 = vector.load %arg0[%c0, %c0_0] : memref<16x32xbf16, #tpu.memory_space<vmem>>, vector<16x32xbf16>
    %c0_1 = arith.constant 0 : index
    %c0_2 = arith.constant 0 : index
    %1 = vector.load %arg1[%c0_1, %c0_2] : memref<32x512xbf16, #tpu.memory_space<vmem>>, vector<32x512xbf16>
    %cst = arith.constant dense<0.000000e+00> : vector<16x512xf32>
    %2 = tpu.matmul %0, %1, %cst {dimension_numbers = #tpu.dot_dimension_numbers<[1], [0], [0], [1], [0, 0, 1, 1], [], []>} : vector<16x32xbf16>, vector<32x512xbf16>, vector<16x512xf32> -> vector<16x512xf32>
    %3 = tpu.iota {dimensions = array<i32: 1>} : vector<1x512xi32>
    %c128_i32 = arith.constant 128 : i32
    %c0_i32 = arith.constant 0 : i32
    %4 = arith.cmpi eq, %c128_i32, %c0_i32 : i32
    %c1_i32 = arith.constant 1 : i32
    %5 = arith.select %4, %c1_i32, %c128_i32 : i32
    %6 = vector.broadcast %5 : i32 to vector<1x512xi32>
    %7 = arith.remsi %3, %6 : vector<1x512xi32>
    %c0_i32_3 = arith.constant 0 : i32
    %8 = vector.broadcast %c0_i32_3 : i32 to vector<1x512xi32>
    %9 = arith.cmpi ne, %7, %8 : vector<1x512xi32>
    %c0_i32_4 = arith.constant 0 : i32
    %10 = vector.broadcast %c0_i32_4 : i32 to vector<1x512xi32>
    %11 = arith.cmpi slt, %7, %10 : vector<1x512xi32>
    %c0_i32_5 = arith.constant 0 : i32
    %12 = arith.cmpi slt, %5, %c0_i32_5 : i32
    %13 = vector.broadcast %12 : i1 to vector<1x512xi1>
    %14 = vector.broadcast %13 : vector<1x512xi1> to vector<1x512xi1>
    %15 = arith.xori %11, %14 : vector<1x512xi1>
    %16 = arith.andi %15, %9 : vector<1x512xi1>
    %17 = vector.broadcast %5 : i32 to vector<1x512xi32>
    %18 = arith.addi %7, %17 : vector<1x512xi32>
    %19 = arith.select %16, %18, %7 : vector<1x512xi1>, vector<1x512xi32>
    %c32_i32 = arith.constant 32 : i32
    %20 = vector.broadcast %c32_i32 : i32 to vector<1x512xi32>
    %21 = arith.cmpi slt, %19, %20 : vector<1x512xi32>
    %c0_6 = arith.constant 0 : index
    %c0_7 = arith.constant 0 : index
    %22 = vector.load %arg2[%c0_6, %c0_7] : memref<1x512xf32, #tpu.memory_space<vmem>>, vector<1x512xf32>
    %23 = vector.extract_strided_slice %2 {offsets = [0, 0], sizes = [2, 512], strides = [1, 1]} : vector<16x512xf32> to vector<2x512xf32>
    %24 = vector.extract_strided_slice %2 {offsets = [14, 0], sizes = [2, 512], strides = [1, 1]} : vector<16x512xf32> to vector<2x512xf32>
    %25 = vector.shape_cast %21 : vector<1x512xi1> to vector<1x512xi1>
    %26 = vector.broadcast %25 : vector<1x512xi1> to vector<2x512xi1>
    %27 = arith.select %26, %23, %24 : vector<2x512xi1>, vector<2x512xf32>
    %28 = vector.broadcast %22 : vector<1x512xf32> to vector<2x512xf32>
    %29 = arith.addf %27, %28 : vector<2x512xf32>
    %30 = vector.extract_strided_slice %2 {offsets = [2, 0], sizes = [2, 512], strides = [1, 1]} : vector<16x512xf32> to vector<2x512xf32>
    %31 = vector.extract_strided_slice %2 {offsets = [12, 0], sizes = [2, 512], strides = [1, 1]} : vector<16x512xf32> to vector<2x512xf32>
    %32 = vector.shape_cast %21 : vector<1x512xi1> to vector<1x512xi1>
    %33 = vector.broadcast %32 : vector<1x512xi1> to vector<2x512xi1>
    %34 = arith.select %33, %30, %31 : vector<2x512xi1>, vector<2x512xf32>
    %35 = vector.broadcast %22 : vector<1x512xf32> to vector<2x512xf32>
    %36 = arith.addf %34, %35 : vector<2x512xf32>
    %37 = vector.extract_strided_slice %2 {offsets = [4, 0], sizes = [2, 512], strides = [1, 1]} : vector<16x512xf32> to vector<2x512xf32>
    %38 = vector.extract_strided_slice %2 {offsets = [10, 0], sizes = [2, 512], strides = [1, 1]} : vector<16x512xf32> to vector<2x512xf32>
    %39 = vector.shape_cast %21 : vector<1x512xi1> to vector<1x512xi1>
    %40 = vector.broadcast %39 : vector<1x512xi1> to vector<2x512xi1>
    %41 = arith.select %40, %37, %38 : vector<2x512xi1>, vector<2x512xf32>
    %42 = vector.broadcast %22 : vector<1x512xf32> to vector<2x512xf32>
    %43 = arith.addf %41, %42 : vector<2x512xf32>
    %44 = vector.extract_strided_slice %2 {offsets = [6, 0], sizes = [2, 512], strides = [1, 1]} : vector<16x512xf32> to vector<2x512xf32>
    %45 = vector.extract_strided_slice %2 {offsets = [8, 0], sizes = [2, 512], strides = [1, 1]} : vector<16x512xf32> to vector<2x512xf32>
    %46 = vector.shape_cast %21 : vector<1x512xi1> to vector<1x512xi1>
    %47 = vector.broadcast %46 : vector<1x512xi1> to vector<2x512xi1>
    %48 = arith.select %47, %44, %45 : vector<2x512xi1>, vector<2x512xf32>
    %49 = vector.broadcast %22 : vector<1x512xf32> to vector<2x512xf32>
    %50 = arith.addf %48, %49 : vector<2x512xf32>
    %51 = vector.extract_strided_slice %2 {offsets = [8, 0], sizes = [2, 512], strides = [1, 1]} : vector<16x512xf32> to vector<2x512xf32>
    %52 = vector.extract_strided_slice %2 {offsets = [6, 0], sizes = [2, 512], strides = [1, 1]} : vector<16x512xf32> to vector<2x512xf32>
    %53 = vector.shape_cast %21 : vector<1x512xi1> to vector<1x512xi1>
    %54 = vector.broadcast %53 : vector<1x512xi1> to vector<2x512xi1>
    %55 = arith.select %54, %51, %52 : vector<2x512xi1>, vector<2x512xf32>
    %56 = vector.broadcast %22 : vector<1x512xf32> to vector<2x512xf32>
    %57 = arith.addf %55, %56 : vector<2x512xf32>
    %58 = vector.extract_strided_slice %2 {offsets = [10, 0], sizes = [2, 512], strides = [1, 1]} : vector<16x512xf32> to vector<2x512xf32>
    %59 = vector.extract_strided_slice %2 {offsets = [4, 0], sizes = [2, 512], strides = [1, 1]} : vector<16x512xf32> to vector<2x512xf32>
    %60 = vector.shape_cast %21 : vector<1x512xi1> to vector<1x512xi1>
    %61 = vector.broadcast %60 : vector<1x512xi1> to vector<2x512xi1>
    %62 = arith.select %61, %58, %59 : vector<2x512xi1>, vector<2x512xf32>
    %63 = vector.broadcast %22 : vector<1x512xf32> to vector<2x512xf32>
    %64 = arith.addf %62, %63 : vector<2x512xf32>
    %65 = vector.extract_strided_slice %2 {offsets = [12, 0], sizes = [2, 512], strides = [1, 1]} : vector<16x512xf32> to vector<2x512xf32>
    %66 = vector.extract_strided_slice %2 {offsets = [2, 0], sizes = [2, 512], strides = [1, 1]} : vector<16x512xf32> to vector<2x512xf32>
    %67 = vector.shape_cast %21 : vector<1x512xi1> to vector<1x512xi1>
    %68 = vector.broadcast %67 : vector<1x512xi1> to vector<2x512xi1>
    %69 = arith.select %68, %65, %66 : vector<2x512xi1>, vector<2x512xf32>
    %70 = vector.broadcast %22 : vector<1x512xf32> to vector<2x512xf32>
    %71 = arith.addf %69, %70 : vector<2x512xf32>
    %72 = vector.extract_strided_slice %2 {offsets = [14, 0], sizes = [2, 512], strides = [1, 1]} : vector<16x512xf32> to vector<2x512xf32>
    %73 = vector.extract_strided_slice %2 {offsets = [0, 0], sizes = [2, 512], strides = [1, 1]} : vector<16x512xf32> to vector<2x512xf32>
    %74 = vector.shape_cast %21 : vector<1x512xi1> to vector<1x512xi1>
    %75 = vector.broadcast %74 : vector<1x512xi1> to vector<2x512xi1>
    %76 = arith.select %75, %72, %73 : vector<2x512xi1>, vector<2x512xf32>
    %77 = vector.broadcast %22 : vector<1x512xf32> to vector<2x512xf32>
    %78 = arith.addf %76, %77 : vector<2x512xf32>
    %c0_8 = arith.constant 0 : index
    %c0_9 = arith.constant 0 : index
    %79 = vector.load %arg3[%c0_8, %c0_9] : memref<128x512xbf16, #tpu.memory_space<vmem>>, vector<128x512xbf16>
    %c0_10 = arith.constant 0 : index
    %c0_11 = arith.constant 0 : index
    %80 = vector.load %arg4[%c0_10, %c0_11] : memref<128x512xbf16, #tpu.memory_space<vmem>>, vector<128x512xbf16>
    %cst_12 = arith.constant 0.000000e+00 : f32
    %81 = vector.broadcast %cst_12 : f32 to vector<2x128xf32>
    %82 = vector.extract_strided_slice %29 {offsets = [0, 0], sizes = [2, 384], strides = [1, 1]} : vector<2x512xf32> to vector<2x384xf32>
    %83 = arith.negf %82 : vector<2x384xf32>
    %84 = math.exp %83 : vector<2x384xf32>
    %cst_13 = arith.constant 1.000000e+00 : f32
    %85 = vector.broadcast %cst_13 : f32 to vector<2x384xf32>
    %86 = arith.addf %85, %84 : vector<2x384xf32>
    %87 = arith.divf %85, %86 : vector<2x384xf32>
    %88 = vector.extract_strided_slice %87 {offsets = [0, 0], sizes = [2, 128], strides = [1, 1]} : vector<2x384xf32> to vector<2x128xf32>
    %89 = vector.extract_strided_slice %87 {offsets = [0, 128], sizes = [2, 128], strides = [1, 1]} : vector<2x384xf32> to vector<2x128xf32>
    %90 = vector.extract_strided_slice %87 {offsets = [0, 256], sizes = [2, 128], strides = [1, 1]} : vector<2x384xf32> to vector<2x128xf32>
    %91 = vector.extract_strided_slice %29 {offsets = [0, 384], sizes = [2, 128], strides = [1, 1]} : vector<2x512xf32> to vector<2x128xf32>
    %92 = math.tanh %91 : vector<2x128xf32>
    %93 = arith.mulf %89, %81 : vector<2x128xf32>
    %94 = arith.mulf %88, %92 : vector<2x128xf32>
    %95 = arith.addf %93, %94 : vector<2x128xf32>
    %96 = math.tanh %95 : vector<2x128xf32>
    %97 = arith.mulf %90, %96 : vector<2x128xf32>
    %98 = arith.truncf %97 : vector<2x128xf32> to vector<2x128xbf16>
    %cst_14 = arith.constant dense<0.000000e+00> : vector<2x512xf32>
    %99 = tpu.matmul %98, %79, %cst_14 {dimension_numbers = #tpu.dot_dimension_numbers<[1], [0], [0], [1], [0, 0, 1, 1], [], []>} : vector<2x128xbf16>, vector<128x512xbf16>, vector<2x512xf32> -> vector<2x512xf32>
    %cst_15 = arith.constant dense<0.000000e+00> : vector<2x512xf32>
    %100 = tpu.matmul %98, %80, %cst_15 {dimension_numbers = #tpu.dot_dimension_numbers<[1], [0], [0], [1], [0, 0, 1, 1], [], []>} : vector<2x128xbf16>, vector<128x512xbf16>, vector<2x512xf32> -> vector<2x512xf32>
    %101 = arith.addf %99, %100 : vector<2x512xf32>
    %102 = arith.addf %36, %101 : vector<2x512xf32>
    %103 = vector.extract_strided_slice %102 {offsets = [0, 0], sizes = [2, 384], strides = [1, 1]} : vector<2x512xf32> to vector<2x384xf32>
    %104 = arith.negf %103 : vector<2x384xf32>
    %105 = math.exp %104 : vector<2x384xf32>
    %cst_16 = arith.constant 1.000000e+00 : f32
    %106 = vector.broadcast %cst_16 : f32 to vector<2x384xf32>
    %107 = arith.addf %106, %105 : vector<2x384xf32>
    %108 = arith.divf %106, %107 : vector<2x384xf32>
    %109 = vector.extract_strided_slice %108 {offsets = [0, 0], sizes = [2, 128], strides = [1, 1]} : vector<2x384xf32> to vector<2x128xf32>
    %110 = vector.extract_strided_slice %108 {offsets = [0, 128], sizes = [2, 128], strides = [1, 1]} : vector<2x384xf32> to vector<2x128xf32>
    %111 = vector.extract_strided_slice %108 {offsets = [0, 256], sizes = [2, 128], strides = [1, 1]} : vector<2x384xf32> to vector<2x128xf32>
    %112 = vector.extract_strided_slice %102 {offsets = [0, 384], sizes = [2, 128], strides = [1, 1]} : vector<2x512xf32> to vector<2x128xf32>
    %113 = math.tanh %112 : vector<2x128xf32>
    %114 = arith.mulf %110, %95 : vector<2x128xf32>
    %115 = arith.mulf %109, %113 : vector<2x128xf32>
    %116 = arith.addf %114, %115 : vector<2x128xf32>
    %117 = math.tanh %116 : vector<2x128xf32>
    %118 = arith.mulf %111, %117 : vector<2x128xf32>
    %119 = arith.maximumf %97, %118 : vector<2x128xf32>
    %120 = arith.truncf %118 : vector<2x128xf32> to vector<2x128xbf16>
    %cst_17 = arith.constant dense<0.000000e+00> : vector<2x512xf32>
    %121 = tpu.matmul %120, %79, %cst_17 {dimension_numbers = #tpu.dot_dimension_numbers<[1], [0], [0], [1], [0, 0, 1, 1], [], []>} : vector<2x128xbf16>, vector<128x512xbf16>, vector<2x512xf32> -> vector<2x512xf32>
    %cst_18 = arith.constant dense<0.000000e+00> : vector<2x512xf32>
    %122 = tpu.matmul %120, %80, %cst_18 {dimension_numbers = #tpu.dot_dimension_numbers<[1], [0], [0], [1], [0, 0, 1, 1], [], []>} : vector<2x128xbf16>, vector<128x512xbf16>, vector<2x512xf32> -> vector<2x512xf32>
    %123 = arith.addf %121, %122 : vector<2x512xf32>
    %124 = arith.addf %43, %123 : vector<2x512xf32>
    %125 = vector.extract_strided_slice %124 {offsets = [0, 0], sizes = [2, 384], strides = [1, 1]} : vector<2x512xf32> to vector<2x384xf32>
    %126 = arith.negf %125 : vector<2x384xf32>
    %127 = math.exp %126 : vector<2x384xf32>
    %cst_19 = arith.constant 1.000000e+00 : f32
    %128 = vector.broadcast %cst_19 : f32 to vector<2x384xf32>
    %129 = arith.addf %128, %127 : vector<2x384xf32>
    %130 = arith.divf %128, %129 : vector<2x384xf32>
    %131 = vector.extract_strided_slice %130 {offsets = [0, 0], sizes = [2, 128], strides = [1, 1]} : vector<2x384xf32> to vector<2x128xf32>
    %132 = vector.extract_strided_slice %130 {offsets = [0, 128], sizes = [2, 128], strides = [1, 1]} : vector<2x384xf32> to vector<2x128xf32>
    %133 = vector.extract_strided_slice %130 {offsets = [0, 256], sizes = [2, 128], strides = [1, 1]} : vector<2x384xf32> to vector<2x128xf32>
    %134 = vector.extract_strided_slice %124 {offsets = [0, 384], sizes = [2, 128], strides = [1, 1]} : vector<2x512xf32> to vector<2x128xf32>
    %135 = math.tanh %134 : vector<2x128xf32>
    %136 = arith.mulf %132, %116 : vector<2x128xf32>
    %137 = arith.mulf %131, %135 : vector<2x128xf32>
    %138 = arith.addf %136, %137 : vector<2x128xf32>
    %139 = math.tanh %138 : vector<2x128xf32>
    %140 = arith.mulf %133, %139 : vector<2x128xf32>
    %141 = arith.maximumf %119, %140 : vector<2x128xf32>
    %142 = arith.truncf %140 : vector<2x128xf32> to vector<2x128xbf16>
    %cst_20 = arith.constant dense<0.000000e+00> : vector<2x512xf32>
    %143 = tpu.matmul %142, %79, %cst_20 {dimension_numbers = #tpu.dot_dimension_numbers<[1], [0], [0], [1], [0, 0, 1, 1], [], []>} : vector<2x128xbf16>, vector<128x512xbf16>, vector<2x512xf32> -> vector<2x512xf32>
    %cst_21 = arith.constant dense<0.000000e+00> : vector<2x512xf32>
    %144 = tpu.matmul %142, %80, %cst_21 {dimension_numbers = #tpu.dot_dimension_numbers<[1], [0], [0], [1], [0, 0, 1, 1], [], []>} : vector<2x128xbf16>, vector<128x512xbf16>, vector<2x512xf32> -> vector<2x512xf32>
    %145 = arith.addf %143, %144 : vector<2x512xf32>
    %146 = arith.addf %50, %145 : vector<2x512xf32>
    %147 = vector.extract_strided_slice %146 {offsets = [0, 0], sizes = [2, 384], strides = [1, 1]} : vector<2x512xf32> to vector<2x384xf32>
    %148 = arith.negf %147 : vector<2x384xf32>
    %149 = math.exp %148 : vector<2x384xf32>
    %cst_22 = arith.constant 1.000000e+00 : f32
    %150 = vector.broadcast %cst_22 : f32 to vector<2x384xf32>
    %151 = arith.addf %150, %149 : vector<2x384xf32>
    %152 = arith.divf %150, %151 : vector<2x384xf32>
    %153 = vector.extract_strided_slice %152 {offsets = [0, 0], sizes = [2, 128], strides = [1, 1]} : vector<2x384xf32> to vector<2x128xf32>
    %154 = vector.extract_strided_slice %152 {offsets = [0, 128], sizes = [2, 128], strides = [1, 1]} : vector<2x384xf32> to vector<2x128xf32>
    %155 = vector.extract_strided_slice %152 {offsets = [0, 256], sizes = [2, 128], strides = [1, 1]} : vector<2x384xf32> to vector<2x128xf32>
    %156 = vector.extract_strided_slice %146 {offsets = [0, 384], sizes = [2, 128], strides = [1, 1]} : vector<2x512xf32> to vector<2x128xf32>
    %157 = math.tanh %156 : vector<2x128xf32>
    %158 = arith.mulf %154, %138 : vector<2x128xf32>
    %159 = arith.mulf %153, %157 : vector<2x128xf32>
    %160 = arith.addf %158, %159 : vector<2x128xf32>
    %161 = math.tanh %160 : vector<2x128xf32>
    %162 = arith.mulf %155, %161 : vector<2x128xf32>
    %163 = arith.maximumf %141, %162 : vector<2x128xf32>
    %164 = arith.truncf %162 : vector<2x128xf32> to vector<2x128xbf16>
    %cst_23 = arith.constant dense<0.000000e+00> : vector<2x512xf32>
    %165 = tpu.matmul %164, %79, %cst_23 {dimension_numbers = #tpu.dot_dimension_numbers<[1], [0], [0], [1], [0, 0, 1, 1], [], []>} : vector<2x128xbf16>, vector<128x512xbf16>, vector<2x512xf32> -> vector<2x512xf32>
    %cst_24 = arith.constant dense<0.000000e+00> : vector<2x512xf32>
    %166 = tpu.matmul %164, %80, %cst_24 {dimension_numbers = #tpu.dot_dimension_numbers<[1], [0], [0], [1], [0, 0, 1, 1], [], []>} : vector<2x128xbf16>, vector<128x512xbf16>, vector<2x512xf32> -> vector<2x512xf32>
    %167 = arith.addf %165, %166 : vector<2x512xf32>
    %168 = arith.addf %57, %167 : vector<2x512xf32>
    %169 = vector.extract_strided_slice %168 {offsets = [0, 0], sizes = [2, 384], strides = [1, 1]} : vector<2x512xf32> to vector<2x384xf32>
    %170 = arith.negf %169 : vector<2x384xf32>
    %171 = math.exp %170 : vector<2x384xf32>
    %cst_25 = arith.constant 1.000000e+00 : f32
    %172 = vector.broadcast %cst_25 : f32 to vector<2x384xf32>
    %173 = arith.addf %172, %171 : vector<2x384xf32>
    %174 = arith.divf %172, %173 : vector<2x384xf32>
    %175 = vector.extract_strided_slice %174 {offsets = [0, 0], sizes = [2, 128], strides = [1, 1]} : vector<2x384xf32> to vector<2x128xf32>
    %176 = vector.extract_strided_slice %174 {offsets = [0, 128], sizes = [2, 128], strides = [1, 1]} : vector<2x384xf32> to vector<2x128xf32>
    %177 = vector.extract_strided_slice %174 {offsets = [0, 256], sizes = [2, 128], strides = [1, 1]} : vector<2x384xf32> to vector<2x128xf32>
    %178 = vector.extract_strided_slice %168 {offsets = [0, 384], sizes = [2, 128], strides = [1, 1]} : vector<2x512xf32> to vector<2x128xf32>
    %179 = math.tanh %178 : vector<2x128xf32>
    %180 = arith.mulf %176, %160 : vector<2x128xf32>
    %181 = arith.mulf %175, %179 : vector<2x128xf32>
    %182 = arith.addf %180, %181 : vector<2x128xf32>
    %183 = math.tanh %182 : vector<2x128xf32>
    %184 = arith.mulf %177, %183 : vector<2x128xf32>
    %185 = arith.maximumf %163, %184 : vector<2x128xf32>
    %186 = arith.truncf %184 : vector<2x128xf32> to vector<2x128xbf16>
    %cst_26 = arith.constant dense<0.000000e+00> : vector<2x512xf32>
    %187 = tpu.matmul %186, %79, %cst_26 {dimension_numbers = #tpu.dot_dimension_numbers<[1], [0], [0], [1], [0, 0, 1, 1], [], []>} : vector<2x128xbf16>, vector<128x512xbf16>, vector<2x512xf32> -> vector<2x512xf32>
    %cst_27 = arith.constant dense<0.000000e+00> : vector<2x512xf32>
    %188 = tpu.matmul %186, %80, %cst_27 {dimension_numbers = #tpu.dot_dimension_numbers<[1], [0], [0], [1], [0, 0, 1, 1], [], []>} : vector<2x128xbf16>, vector<128x512xbf16>, vector<2x512xf32> -> vector<2x512xf32>
    %189 = arith.addf %187, %188 : vector<2x512xf32>
    %190 = arith.addf %64, %189 : vector<2x512xf32>
    %191 = vector.extract_strided_slice %190 {offsets = [0, 0], sizes = [2, 384], strides = [1, 1]} : vector<2x512xf32> to vector<2x384xf32>
    %192 = arith.negf %191 : vector<2x384xf32>
    %193 = math.exp %192 : vector<2x384xf32>
    %cst_28 = arith.constant 1.000000e+00 : f32
    %194 = vector.broadcast %cst_28 : f32 to vector<2x384xf32>
    %195 = arith.addf %194, %193 : vector<2x384xf32>
    %196 = arith.divf %194, %195 : vector<2x384xf32>
    %197 = vector.extract_strided_slice %196 {offsets = [0, 0], sizes = [2, 128], strides = [1, 1]} : vector<2x384xf32> to vector<2x128xf32>
    %198 = vector.extract_strided_slice %196 {offsets = [0, 128], sizes = [2, 128], strides = [1, 1]} : vector<2x384xf32> to vector<2x128xf32>
    %199 = vector.extract_strided_slice %196 {offsets = [0, 256], sizes = [2, 128], strides = [1, 1]} : vector<2x384xf32> to vector<2x128xf32>
    %200 = vector.extract_strided_slice %190 {offsets = [0, 384], sizes = [2, 128], strides = [1, 1]} : vector<2x512xf32> to vector<2x128xf32>
    %201 = math.tanh %200 : vector<2x128xf32>
    %202 = arith.mulf %198, %182 : vector<2x128xf32>
    %203 = arith.mulf %197, %201 : vector<2x128xf32>
    %204 = arith.addf %202, %203 : vector<2x128xf32>
    %205 = math.tanh %204 : vector<2x128xf32>
    %206 = arith.mulf %199, %205 : vector<2x128xf32>
    %207 = arith.maximumf %185, %206 : vector<2x128xf32>
    %208 = arith.truncf %206 : vector<2x128xf32> to vector<2x128xbf16>
    %cst_29 = arith.constant dense<0.000000e+00> : vector<2x512xf32>
    %209 = tpu.matmul %208, %79, %cst_29 {dimension_numbers = #tpu.dot_dimension_numbers<[1], [0], [0], [1], [0, 0, 1, 1], [], []>} : vector<2x128xbf16>, vector<128x512xbf16>, vector<2x512xf32> -> vector<2x512xf32>
    %cst_30 = arith.constant dense<0.000000e+00> : vector<2x512xf32>
    %210 = tpu.matmul %208, %80, %cst_30 {dimension_numbers = #tpu.dot_dimension_numbers<[1], [0], [0], [1], [0, 0, 1, 1], [], []>} : vector<2x128xbf16>, vector<128x512xbf16>, vector<2x512xf32> -> vector<2x512xf32>
    %211 = arith.addf %209, %210 : vector<2x512xf32>
    %212 = arith.addf %71, %211 : vector<2x512xf32>
    %213 = vector.extract_strided_slice %212 {offsets = [0, 0], sizes = [2, 384], strides = [1, 1]} : vector<2x512xf32> to vector<2x384xf32>
    %214 = arith.negf %213 : vector<2x384xf32>
    %215 = math.exp %214 : vector<2x384xf32>
    %cst_31 = arith.constant 1.000000e+00 : f32
    %216 = vector.broadcast %cst_31 : f32 to vector<2x384xf32>
    %217 = arith.addf %216, %215 : vector<2x384xf32>
    %218 = arith.divf %216, %217 : vector<2x384xf32>
    %219 = vector.extract_strided_slice %218 {offsets = [0, 0], sizes = [2, 128], strides = [1, 1]} : vector<2x384xf32> to vector<2x128xf32>
    %220 = vector.extract_strided_slice %218 {offsets = [0, 128], sizes = [2, 128], strides = [1, 1]} : vector<2x384xf32> to vector<2x128xf32>
    %221 = vector.extract_strided_slice %218 {offsets = [0, 256], sizes = [2, 128], strides = [1, 1]} : vector<2x384xf32> to vector<2x128xf32>
    %222 = vector.extract_strided_slice %212 {offsets = [0, 384], sizes = [2, 128], strides = [1, 1]} : vector<2x512xf32> to vector<2x128xf32>
    %223 = math.tanh %222 : vector<2x128xf32>
    %224 = arith.mulf %220, %204 : vector<2x128xf32>
    %225 = arith.mulf %219, %223 : vector<2x128xf32>
    %226 = arith.addf %224, %225 : vector<2x128xf32>
    %227 = math.tanh %226 : vector<2x128xf32>
    %228 = arith.mulf %221, %227 : vector<2x128xf32>
    %229 = arith.maximumf %207, %228 : vector<2x128xf32>
    %230 = arith.truncf %228 : vector<2x128xf32> to vector<2x128xbf16>
    %cst_32 = arith.constant dense<0.000000e+00> : vector<2x512xf32>
    %231 = tpu.matmul %230, %79, %cst_32 {dimension_numbers = #tpu.dot_dimension_numbers<[1], [0], [0], [1], [0, 0, 1, 1], [], []>} : vector<2x128xbf16>, vector<128x512xbf16>, vector<2x512xf32> -> vector<2x512xf32>
    %cst_33 = arith.constant dense<0.000000e+00> : vector<2x512xf32>
    %232 = tpu.matmul %230, %80, %cst_33 {dimension_numbers = #tpu.dot_dimension_numbers<[1], [0], [0], [1], [0, 0, 1, 1], [], []>} : vector<2x128xbf16>, vector<128x512xbf16>, vector<2x512xf32> -> vector<2x512xf32>
    %233 = arith.addf %231, %232 : vector<2x512xf32>
    %234 = arith.addf %78, %233 : vector<2x512xf32>
    %235 = vector.extract_strided_slice %234 {offsets = [0, 0], sizes = [2, 384], strides = [1, 1]} : vector<2x512xf32> to vector<2x384xf32>
    %236 = arith.negf %235 : vector<2x384xf32>
    %237 = math.exp %236 : vector<2x384xf32>
    %cst_34 = arith.constant 1.000000e+00 : f32
    %238 = vector.broadcast %cst_34 : f32 to vector<2x384xf32>
    %239 = arith.addf %238, %237 : vector<2x384xf32>
    %240 = arith.divf %238, %239 : vector<2x384xf32>
    %241 = vector.extract_strided_slice %240 {offsets = [0, 0], sizes = [2, 128], strides = [1, 1]} : vector<2x384xf32> to vector<2x128xf32>
    %242 = vector.extract_strided_slice %240 {offsets = [0, 128], sizes = [2, 128], strides = [1, 1]} : vector<2x384xf32> to vector<2x128xf32>
    %243 = vector.extract_strided_slice %240 {offsets = [0, 256], sizes = [2, 128], strides = [1, 1]} : vector<2x384xf32> to vector<2x128xf32>
    %244 = vector.extract_strided_slice %234 {offsets = [0, 384], sizes = [2, 128], strides = [1, 1]} : vector<2x512xf32> to vector<2x128xf32>
    %245 = math.tanh %244 : vector<2x128xf32>
    %246 = arith.mulf %242, %226 : vector<2x128xf32>
    %247 = arith.mulf %241, %245 : vector<2x128xf32>
    %248 = arith.addf %246, %247 : vector<2x128xf32>
    %249 = math.tanh %248 : vector<2x128xf32>
    %250 = arith.mulf %243, %249 : vector<2x128xf32>
    %251 = arith.maximumf %229, %250 : vector<2x128xf32>
    %c0_35 = arith.constant 0 : index
    %c0_36 = arith.constant 0 : index
    %252 = vector.load %arg5[%c0_35, %c0_36] : memref<128x32xf32, #tpu.memory_space<vmem>>, vector<128x32xf32>
    %cst_37 = arith.constant dense<0.000000e+00> : vector<2x32xf32>
    %253 = tpu.matmul %251, %252, %cst_37 {dimension_numbers = #tpu.dot_dimension_numbers<[1], [0], [0], [1], [0, 0, 1, 1], [], []>} : vector<2x128xf32>, vector<128x32xf32>, vector<2x32xf32> -> vector<2x32xf32>
    %c0_38 = arith.constant 0 : index
    %c0_39 = arith.constant 0 : index
    %254 = vector.load %arg6[%c0_38, %c0_39] : memref<1x32xf32, #tpu.memory_space<vmem>>, vector<1x32xf32>
    %255 = vector.broadcast %254 : vector<1x32xf32> to vector<2x32xf32>
    %256 = arith.addf %253, %255 : vector<2x32xf32>
    %cst_40 = arith.constant 0.000000e+00 : f32
    %257 = vector.broadcast %cst_40 : f32 to vector<2x32xf32>
    %258 = arith.maximumf %256, %257 : vector<2x32xf32>
    %c0_41 = arith.constant 0 : index
    %c0_42 = arith.constant 0 : index
    %259 = vector.load %arg7[%c0_41, %c0_42] : memref<32x8xf32, #tpu.memory_space<vmem>>, vector<32x8xf32>
    %cst_43 = arith.constant dense<0.000000e+00> : vector<2x8xf32>
    %260 = tpu.matmul %258, %259, %cst_43 {dimension_numbers = #tpu.dot_dimension_numbers<[1], [0], [0], [1], [0, 0, 1, 1], [], []>} : vector<2x32xf32>, vector<32x8xf32>, vector<2x8xf32> -> vector<2x8xf32>
    %c0_44 = arith.constant 0 : index
    %c0_45 = arith.constant 0 : index
    %261 = vector.load %arg8[%c0_44, %c0_45] : memref<1x8xf32, #tpu.memory_space<vmem>>, vector<1x8xf32>
    %262 = vector.broadcast %261 : vector<1x8xf32> to vector<2x8xf32>
    %263 = arith.addf %260, %262 : vector<2x8xf32>
    %cst_46 = arith.constant dense<0xFF800000> : vector<2xf32>
    %264 = vector.multi_reduction <maximumf>, %263, %cst_46 [1] : vector<2x8xf32> to vector<2xf32>
    %265 = vector.shape_cast %264 : vector<2xf32> to vector<2x1xf32>
    %266 = vector.broadcast %265 : vector<2x1xf32> to vector<2x8xf32>
    %267 = arith.subf %263, %266 : vector<2x8xf32>
    %268 = math.exp %267 : vector<2x8xf32>
    %cst_47 = arith.constant dense<0.000000e+00> : vector<2xf32>
    %269 = vector.multi_reduction <add>, %268, %cst_47 [1] : vector<2x8xf32> to vector<2xf32>
    %270 = vector.shape_cast %269 : vector<2xf32> to vector<2x1xf32>
    %271 = vector.broadcast %270 : vector<2x1xf32> to vector<2x8xf32>
    %272 = arith.divf %268, %271 : vector<2x8xf32>
    %c0_48 = arith.constant 0 : index
    %c0_49 = arith.constant 0 : index
    %273 = vector.load %arg9[%c0_48, %c0_49] : memref<2x8xf32, #tpu.memory_space<vmem>>, vector<2x8xf32>
    tpu.vector_store %arg9[%c0_48, %c0_49], %272 {strides = array<i32>} : memref<2x8xf32, #tpu.memory_space<vmem>>, vector<2x8xf32>,
    return
  }
}

</mosaic_0001>

<llo_original>
// kernel: tpu_custom_call.1
$region0: #{tpu_custom_call.1}
  #allocation0 [shape = 'u32[]', space=smem, size = 0x4, offset = 0x4, fixed_abs, tag = 'smem constant byte address 0x4 - core index']
  #allocation1 [shape = 'u32[144,128]{1,0:T(1,128)}', space=vmem, size = 0x12000, scoped, tag = 'internal scratch']
  %s0 = inlined_call_operand.vmem [shape: bf16[16,32], index: 0, kind: input, shape index: {}]
  %s1 = inlined_call_operand.vmem [shape: bf16[32,512], index: 1, kind: input, shape index: {}]
  %s2 = inlined_call_operand.vmem [shape: f32[1,512], index: 2, kind: input, shape index: {}]
  %s3 = inlined_call_operand.hbm [shape: bf16[128,512], index: 3, kind: input, shape index: {}]
  %s4 = inlined_call_operand.hbm [shape: bf16[128,512], index: 4, kind: input, shape index: {}]
  %s5 = inlined_call_operand.vmem [shape: f32[128,32], index: 5, kind: input, shape index: {}]
  %s6 = inlined_call_operand.vmem [shape: f32[1,32], index: 6, kind: input, shape index: {}]
  %s7 = inlined_call_operand.vmem [shape: f32[32,8], index: 7, kind: input, shape index: {}]
  %s8 = inlined_call_operand.vmem [shape: f32[1,8], index: 8, kind: input, shape index: {}]
  %s9 = inlined_call_operand.hbm [shape: f32[2,8], index: 9, kind: output, shape index: {}]
  %s10 = sld [smem:[#allocation0]]
  $region54: #{tpu_custom_call.1} parent=0
    _
  %s12 = ssub.s32 1, %s10
  %s13 = scalar_select 0, %s12, %s10
  $region1: #{tpu_custom_call.1} parent=0
    #allocation2 [shape = 'u8[131072]{0}', space=vmem, size = 0x20000, scoped, tag = 'input window, operand 3, single buffered']
    #allocation3 [shape = 's32[1]{0}', space=sflag, size = 0x4, scoped, tag = 'scoped memory for tpu_custom_call.1']
    #allocation4 [shape = 's32[1]{0}', space=sflag, size = 0x4, scoped, tag = 'scoped memory for tpu_custom_call.1']
    #allocation5 [shape = 'u8[131072]{0}', space=vmem, size = 0x20000, scoped, tag = 'input window, operand 4, single buffered']
    #allocation6 [shape = 's32[1]{0}', space=sflag, size = 0x4, scoped, tag = 'scoped memory for tpu_custom_call.1']
    #allocation7 [shape = 'u8[1024]{0}', space=vmem, size = 0x400, scoped, tag = 'output window, operand 0, single buffered']
    %14 = vsyncpa [#allocation3], 0
    %15 = vsyncpa [#allocation6], 0
    %16 = vsyncpa [#allocation4], 0
    // Predicated region
    $region2: #{tpu_custom_call.1} parent=1 // pred_check
      _
    $region3: #{tpu_custom_call.1} parent=1 // pred_check_branch
      %18 = sbr.rel (0) target = $region5
    $region4: #{tpu_custom_call.1} parent=1 // pred_region
      _
    $region5: #{tpu_custom_call.1} parent=1 // pred_fallthru
      _
    // Predicated region
    $region6: #{tpu_custom_call.1} parent=1 // pred_check
      _
    $region7: #{tpu_custom_call.1} parent=1 // pred_check_branch
      %20 = sbr.rel (0) target = $region9
    $region8: #{tpu_custom_call.1} parent=1 // pred_region
      _
    $region9: #{tpu_custom_call.1} parent=1 // pred_fallthru
      _
    // Predicated region
    $region10: #{tpu_custom_call.1} parent=1 // pred_check
      _
    $region11: #{tpu_custom_call.1} parent=1 // pred_check_branch
      %22 = sbr.rel (0) target = $region13
    $region12: #{tpu_custom_call.1} parent=1 // pred_region
      _
    $region13: #{tpu_custom_call.1} parent=1 // pred_fallthru
      _
    // Predicated region
    $region14: #{tpu_custom_call.1} parent=1 // pred_check
      _
    $region15: #{tpu_custom_call.1} parent=1 // pred_check_branch
      %24 = sbr.rel (0) target = $region17
    $region16: #{tpu_custom_call.1} parent=1 // pred_region
      %s26 = ssub.s32 4096, 4096
      %27 = vsyncadd [#allocation3], %s26
      %s28 = sshll.u32 [#allocation2], 4
      %s29 = int_to_ptr.vmem [resolvable:$true] %s28
      %34 = dma.hbm_to_vmem [thread:$0]  %s3, 4096, %s29, [#allocation3], 256, 256, 16
    $region17: #{tpu_custom_call.1} parent=1 // pred_fallthru
      _
    // Predicated region
    $region18: #{tpu_custom_call.1} parent=1 // pred_check
      _
    $region19: #{tpu_custom_call.1} parent=1 // pred_check_branch
      %36 = sbr.rel (0) target = $region21
    $region20: #{tpu_custom_call.1} parent=1 // pred_region
      %s38 = ssub.s32 4096, 4096
      %39 = vsyncadd [#allocation6], %s38
      %s40 = sshll.u32 [#allocation5], 4
      %s41 = int_to_ptr.vmem [resolvable:$true] %s40
      %46 = dma.hbm_to_vmem [thread:$0]  %s4, 4096, %s41, [#allocation6], 256, 256, 16
    $region21: #{tpu_custom_call.1} parent=1 // pred_fallthru
      _
    // Predicated region
    $region22: #{tpu_custom_call.1} parent=1 // pred_check
      _
    $region23: #{tpu_custom_call.1} parent=1 // pred_check_branch
      %48 = sbr.rel (0) target = $region25
    $region24: #{tpu_custom_call.1} parent=1 // pred_region
      _
    $region25: #{tpu_custom_call.1} parent=1 // pred_fallthru
      _
    // Predicated region
    $region26: #{tpu_custom_call.1} parent=1 // pred_check
      _
    $region27: #{tpu_custom_call.1} parent=1 // pred_check_branch
      %50 = sbr.rel (0) target = $region29
    $region28: #{tpu_custom_call.1} parent=1 // pred_region
      _
    $region29: #{tpu_custom_call.1} parent=1 // pred_fallthru
      _
    // Predicated region
    $region30: #{tpu_custom_call.1} parent=1 // pred_check
      _
    $region31: #{tpu_custom_call.1} parent=1 // pred_check_branch
      %52 = sbr.rel (0) target = $region33
    $region32: #{tpu_custom_call.1} parent=1 // pred_region
      _
    $region33: #{tpu_custom_call.1} parent=1 // pred_fallthru
      _
    // Predicated region
    $region34: #{tpu_custom_call.1} parent=1 // pred_check
      _
    $region35: #{tpu_custom_call.1} parent=1 // pred_check_branch
      %54 = sbr.rel (0) target = $region37
    $region36: #{tpu_custom_call.1} parent=1 // pred_region
      _
    $region37: #{tpu_custom_call.1} parent=1 // pred_fallthru
      _
    // Predicated region
    $region38: #{tpu_custom_call.1} parent=1 // pred_check
      _
    $region39: #{tpu_custom_call.1} parent=1 // pred_check_branch
      %56 = sbr.rel (0) target = $region41
    $region40: #{tpu_custom_call.1} parent=1 // pred_region
      %57 = dma.done [#allocation3], 4096
    $region41: #{tpu_custom_call.1} parent=1 // pred_fallthru
      _
    // Predicated region
    $region42: #{tpu_custom_call.1} parent=1 // pred_check
      _
    $region43: #{tpu_custom_call.1} parent=1 // pred_check_branch
      %59 = sbr.rel (0) target = $region45
    $region44: #{tpu_custom_call.1} parent=1 // pred_region
      %60 = dma.done [#allocation6], 4096
    $region45: #{tpu_custom_call.1} parent=1 // pred_fallthru
      _
    %v62 = vld [vmem:[%s0] sm:$0xf]
    %v63 = vld [vmem:[%s0 + $0x4] sm:$0xf]
    %v64 = vld [vmem:[%s1] sm:$0xff]
    %v65 = vld [vmem:[%s1 + $0x8] sm:$0xff]
    %v66 = vld [vmem:[%s1 + $0x10] sm:$0xff]
    %v67 = vld [vmem:[%s1 + $0x18] sm:$0xff]
    %v68 = vld [vmem:[%s1 + $0x20] sm:$0xff]
    %v69 = vld [vmem:[%s1 + $0x28] sm:$0xff]
    %v70 = vld [vmem:[%s1 + $0x30] sm:$0xff]
    %v71 = vld [vmem:[%s1 + $0x38] sm:$0xff]
    %v74 = vunpack.c.l.b16 %v62
    %v75 = vunpack.c.l.b16 %v63
    %v76 = vpack.c.b16 %v75, %v74
    %v85 = vunpack.c.l.b16 %v64
    %v86 = vunpack.c.h.b16 %v64
    %v87 = vunpack.c.l.b16 %v65
    %v88 = vunpack.c.h.b16 %v65
    %v89 = vunpack.c.l.b16 %v66
    %v90 = vunpack.c.h.b16 %v66
    %v91 = vunpack.c.l.b16 %v67
    %v92 = vunpack.c.h.b16 %v67
    %v93 = vunpack.c.l.b16 %v68
    %v94 = vunpack.c.h.b16 %v68
    %v95 = vunpack.c.l.b16 %v69
    %v96 = vunpack.c.h.b16 %v69
    %v97 = vunpack.c.l.b16 %v70
    %v98 = vunpack.c.h.b16 %v70
    %v99 = vunpack.c.l.b16 %v71
    %v100 = vunpack.c.h.b16 %v71
    %v101 = vpack.c.b16 %v89, %v85
    %v102 = vpack.c.b16 %v90, %v86
    %v103 = vpack.c.b16 %v91, %v87
    %v104 = vpack.c.b16 %v92, %v88
    %v105 = vpack.c.b16 %v97, %v93
    %v106 = vpack.c.b16 %v98, %v94
    %v107 = vpack.c.b16 %v99, %v95
    %v108 = vpack.c.b16 %v100, %v96
    %vm117 = vcmask 261120
    %v119 = vsel %vm117, %v76, 0
    %121 = vmatprep.subr.bf16.mxu0 %v102
    %122 = vmatpush1.bf16.msra.mxu0 %v101
    %123 = vmatprep.subr.bf16.mxu0 %v106
    %124 = vmatpush1.bf16.msra.mxu0 %v105
    %125 = vmatprep.subr.bf16.mxu0 0
    %126 = vmatpush1.bf16.msra.mxu0 0
    %127 = vmatprep.subr.bf16.mxu0 0
    %128 = vmatpush1.bf16.msra.mxu0 0
    %129 = vmatprep.subr.bf16.mxu0 0
    %130 = vmatpush1.bf16.msra.mxu0 0
    %131 = vmatprep.subr.bf16.mxu0 0
    %132 = vmatpush1.bf16.msra.mxu0 0
    %133 = vmatprep.subr.bf16.mxu0 0
    %134 = vmatpush1.bf16.msra.mxu0 0
    %135 = vmatprep.subr.bf16.mxu0 0
    %136 = vmatpush1.bf16.msra.mxu0 0
    %137 = vmatprep.subr.bf16.mxu0 0
    %138 = vmatpush1.bf16.msra.mxu0 0
    %139 = vmatprep.subr.bf16.mxu0 0
    %140 = vmatpush1.bf16.msra.mxu0 0
    %141 = vmatprep.subr.bf16.mxu0 0
    %142 = vmatpush1.bf16.msra.mxu0 0
    %143 = vmatprep.subr.bf16.mxu0 0
    %144 = vmatpush1.bf16.msra.mxu0 0
    %145 = vmatprep.subr.bf16.mxu0 0
    %146 = vmatpush1.bf16.msra.mxu0 0
    %147 = vmatprep.subr.bf16.mxu0 0
    %148 = vmatpush1.bf16.msra.mxu0 0
    %149 = vmatprep.subr.bf16.mxu0 0
    %150 = vmatpush1.bf16.msra.mxu0 0
    %151 = vmatprep.subr.bf16.mxu0 0
    %152 = vmatpush1.bf16.msra.mxu0 0
    %153 = vmatprep.mubr.bf16.mxu0 0
    %154 = vmatmul.mubr.bf16.gmra.mrb[0].mxu0 %v119
    %v155 = vpop.f32.mrb[0].mxu0
    %v156 = vadd.f32 0.0, %v155
    %v157 = vpop.f32.mrb[0].mxu0
    %v158 = vadd.f32 0.0, %v157
    %v159 = vpop.f32.mrb[0].mxu0
    %v160 = vadd.f32 0.0, %v159
    %v161 = vpop.f32.mrb[0].mxu0
    %v162 = vadd.f32 0.0, %v161
    %163 = vdwg.mxu0
    %164 = vmatprep.subr.bf16.mxu0 %v104
    %165 = vmatpush1.bf16.msra.mxu0 %v103
    %166 = vmatprep.subr.bf16.mxu0 %v108
    %167 = vmatpush1.bf16.msra.mxu0 %v107
    %168 = vmatprep.subr.bf16.mxu0 0
    %169 = vmatpush1.bf16.msra.mxu0 0
    %170 = vmatprep.subr.bf16.mxu0 0
    %171 = vmatpush1.bf16.msra.mxu0 0
    %172 = vmatprep.subr.bf16.mxu0 0
    %173 = vmatpush1.bf16.msra.mxu0 0
    %174 = vmatprep.subr.bf16.mxu0 0
    %175 = vmatpush1.bf16.msra.mxu0 0
    %176 = vmatprep.subr.bf16.mxu0 0
    %177 = vmatpush1.bf16.msra.mxu0 0
    %178 = vmatprep.subr.bf16.mxu0 0
    %179 = vmatpush1.bf16.msra.mxu0 0
    %180 = vmatprep.subr.bf16.mxu0 0
    %181 = vmatpush1.bf16.msra.mxu0 0
    %182 = vmatprep.subr.bf16.mxu0 0
    %183 = vmatpush1.bf16.msra.mxu0 0
    %184 = vmatprep.subr.bf16.mxu0 0
    %185 = vmatpush1.bf16.msra.mxu0 0
    %186 = vmatprep.subr.bf16.mxu0 0
    %187 = vmatpush1.bf16.msra.mxu0 0
    %188 = vmatprep.subr.bf16.mxu0 0
    %189 = vmatpush1.bf16.msra.mxu0 0
    %190 = vmatprep.subr.bf16.mxu0 0
    %191 = vmatpush1.bf16.msra.mxu0 0
    %192 = vmatprep.subr.bf16.mxu0 0
    %193 = vmatpush1.bf16.msra.mxu0 0
    %194 = vmatprep.subr.bf16.mxu0 0
    %195 = vmatpush1.bf16.msra.mxu0 0
    %196 = vmatprep.mubr.bf16.mxu0 0
    %197 = vmatmul.mubr.bf16.gmra.mrb[0].mxu0 %v119
    %v198 = vpop.f32.mrb[0].mxu0
    %v199 = vadd.f32 0.0, %v198
    %v200 = vpop.f32.mrb[0].mxu0
    %v201 = vadd.f32 0.0, %v200
    %v202 = vpop.f32.mrb[0].mxu0
    %v203 = vadd.f32 0.0, %v202
    %v204 = vpop.f32.mrb[0].mxu0
    %v205 = vadd.f32 0.0, %v204
    %206 = vdwg.mxu0
    %v207 = vlaneseq
    %v208 = vand.u32 %v207, 127
    %v209 = vadd.s32 %v208, 128
    %v210 = vadd.s32 %v208, 256
    %v211 = vadd.s32 %v208, 384
    %vm212 = vcmp.lt.s32.totalorder %v208, 0
    %v213 = vsub.s32 0, %v208
    %v214 = vsel %vm212, %v213, %v208
    %v215 = vshrl.u32 %v214, 7
    %v216 = vand.u32 %v214, 127
    %v217 = vsub.s32 0, %v216
    %v218 = vsel %vm212, %v217, %v216
    %vm219 = vcmp.lt.s32.totalorder %v209, 0
    %v220 = vsub.s32 0, %v209
    %v221 = vsel %vm219, %v220, %v209
    %v222 = vshrl.u32 %v221, 7
    %v223 = vand.u32 %v221, 127
    %v224 = vsub.s32 0, %v223
    %v225 = vsel %vm219, %v224, %v223
    %vm226 = vcmp.lt.s32.totalorder %v210, 0
    %v227 = vsub.s32 0, %v210
    %v228 = vsel %vm226, %v227, %v210
    %v229 = vshrl.u32 %v228, 7
    %v230 = vand.u32 %v228, 127
    %v231 = vsub.s32 0, %v230
    %v232 = vsel %vm226, %v231, %v230
    %vm233 = vcmp.lt.s32.totalorder %v211, 0
    %v234 = vsub.s32 0, %v211
    %v235 = vsel %vm233, %v234, %v211
    %v236 = vshrl.u32 %v235, 7
    %v237 = vand.u32 %v235, 127
    %v238 = vsub.s32 0, %v237
    %v239 = vsel %vm233, %v238, %v237
    %vm240 = vcmp.ne.s32.totalorder %v218, 0
    %vm241 = vcmp.ne.s32.totalorder %v225, 0
    %vm242 = vcmp.ne.s32.totalorder %v232, 0
    %vm243 = vcmp.ne.s32.totalorder %v239, 0
    %vm244 = vcmp.lt.s32.totalorder %v218, 0
    %vm245 = vcmp.lt.s32.totalorder %v225, 0
    %vm246 = vcmp.lt.s32.totalorder %v232, 0
    %vm247 = vcmp.lt.s32.totalorder %v239, 0
    %vm248 = vmand %vm244, %vm240
    %vm249 = vmand %vm245, %vm241
    %vm250 = vmand %vm246, %vm242
    %vm251 = vmand %vm247, %vm243
    %v252 = vadd.s32 %v218, 128
    %v253 = vadd.s32 %v225, 128
    %v254 = vadd.s32 %v232, 128
    %v255 = vadd.s32 %v239, 128
    %v256 = vsel %vm248, %v252, %v218
    %v257 = vsel %vm249, %v253, %v225
    %v258 = vsel %vm250, %v254, %v232
    %v259 = vsel %vm251, %v255, %v239
    %vm260 = vcmp.lt.s32.totalorder %v256, 32
    %vm261 = vcmp.lt.s32.totalorder %v257, 32
    %vm262 = vcmp.lt.s32.totalorder %v258, 32
    %vm263 = vcmp.lt.s32.totalorder %v259, 32
    %v264 = vld [vmem:[%s2] sm:$0xf]
    %v265 = vsel %vm260, 1, 0
    %v266 = vsel %vm261, 1, 0
    %v267 = vsel %vm262, 1, 0
    %v268 = vsel %vm263, 1, 0
    %vm269 = vcmp.eq.s32.totalorder %v265, 1
    %vm270 = vcmp.eq.s32.totalorder %v266, 1
    %vm271 = vcmp.eq.s32.totalorder %v267, 1
    %vm272 = vcmp.eq.s32.totalorder %v268, 1
    %v277 = vrot.slane %v160, 6
    %v278 = vrot.slane %v162, 6
    %v279 = vrot.slane %v203, 6
    %v280 = vrot.slane %v205, 6
    %v285 = vsel %vm269, %v156, %v277
    %v286 = vsel %vm270, %v158, %v278
    %v287 = vsel %vm271, %v199, %v279
    %v288 = vsel %vm272, %v201, %v280
    %v290 = vlaneseq
    %v291 = vshrl.u32 %v290, 7
    %v292 = vsub.s32 0, %v291
    %v293 = vrot.slane %v264, %v292
    %v294 = vlaneseq
    %v295 = vshrl.u32 %v294, 7
    %v296 = vsub.s32 1, %v295
    %v297 = vrot.slane %v264, %v296
    %v298 = vlaneseq
    %v299 = vshrl.u32 %v298, 7
    %v300 = vsub.s32 2, %v299
    %v301 = vrot.slane %v264, %v300
    %v302 = vlaneseq
    %v303 = vshrl.u32 %v302, 7
    %v304 = vsub.s32 3, %v303
    %v305 = vrot.slane %v264, %v304
    %v310 = vadd.f32 %v285, %v293
    %v311 = vadd.f32 %v286, %v297
    %v312 = vadd.f32 %v287, %v301
    %v313 = vadd.f32 %v288, %v305
    %v314 = vrot.slane %v160, 2
    %v315 = vrot.slane %v162, 2
    %v316 = vrot.slane %v203, 2
    %v317 = vrot.slane %v205, 2
    %v322 = vsel %vm269, %v156, %v314
    %v323 = vsel %vm270, %v158, %v315
    %v324 = vsel %vm271, %v199, %v316
    %v325 = vsel %vm272, %v201, %v317
    %v326 = vadd.f32 %v322, %v293
    %v327 = vadd.f32 %v323, %v297
    %v328 = vadd.f32 %v324, %v301
    %v329 = vadd.f32 %v325, %v305
    %v334 = vrot.slane %v156, 6
    %v335 = vrot.slane %v158, 6
    %v336 = vrot.slane %v199, 6
    %v337 = vrot.slane %v201, 6
    %v342 = vsel %vm269, %v160, %v334
    %v343 = vsel %vm270, %v162, %v335
    %v344 = vsel %vm271, %v203, %v336
    %v345 = vsel %vm272, %v205, %v337
    %v346 = vadd.f32 %v342, %v293
    %v347 = vadd.f32 %v343, %v297
    %v348 = vadd.f32 %v344, %v301
    %v349 = vadd.f32 %v345, %v305
    %v350 = vrot.slane %v156, 2
    %v351 = vrot.slane %v158, 2
    %v352 = vrot.slane %v199, 2
    %v353 = vrot.slane %v201, 2
    %v358 = vsel %vm269, %v160, %v350
    %v359 = vsel %vm270, %v162, %v351
    %v360 = vsel %vm271, %v203, %v352
    %v361 = vsel %vm272, %v205, %v353
    %v362 = vadd.f32 %v358, %v293
    %v363 = vadd.f32 %v359, %v297
    %v364 = vadd.f32 %v360, %v301
    %v365 = vadd.f32 %v361, %v305
    %v366 = vld [vmem:[#allocation2] sm:$0xff]
    %v367 = vld [vmem:[#allocation2 + $0x8] sm:$0xff]
    %v368 = vld [vmem:[#allocation2 + $0x10] sm:$0xff]
    %v369 = vld [vmem:[#allocation2 + $0x18] sm:$0xff]
    %v370 = vld [vmem:[#allocation2 + $0x20] sm:$0xff]
    %v371 = vld [vmem:[#allocation2 + $0x28] sm:$0xff]
    %v372 = vld [vmem:[#allocation2 + $0x30] sm:$0xff]
    %v373 = vld [vmem:[#allocation2 + $0x38] sm:$0xff]
    %v374 = vld [vmem:[#allocation2 + $0x40] sm:$0xff]
    %v375 = vld [vmem:[#allocation2 + $0x48] sm:$0xff]
    %v376 = vld [vmem:[#allocation2 + $0x50] sm:$0xff]
    %v377 = vld [vmem:[#allocation2 + $0x58] sm:$0xff]
    %v378 = vld [vmem:[#allocation2 + $0x60] sm:$0xff]
    %v379 = vld [vmem:[#allocation2 + $0x68] sm:$0xff]
    %v380 = vld [vmem:[#allocation2 + $0x70] sm:$0xff]
    %v381 = vld [vmem:[#allocation2 + $0x78] sm:$0xff]
    %v382 = vld [vmem:[#allocation2 + $0x80] sm:$0xff]
    %v383 = vld [vmem:[#allocation2 + $0x88] sm:$0xff]
    %v384 = vld [vmem:[#allocation2 + $0x90] sm:$0xff]
    %v385 = vld [vmem:[#allocation2 + $0x98] sm:$0xff]
    %v386 = vld [vmem:[#allocation2 + $0xa0] sm:$0xff]
    %v387 = vld [vmem:[#allocation2 + $0xa8] sm:$0xff]
    %v388 = vld [vmem:[#allocation2 + $0xb0] sm:$0xff]
    %v389 = vld [vmem:[#allocation2 + $0xb8] sm:$0xff]
    %v390 = vld [vmem:[#allocation2 + $0xc0] sm:$0xff]
    %v391 = vld [vmem:[#allocation2 + $0xc8] sm:$0xff]
    %v392 = vld [vmem:[#allocation2 + $0xd0] sm:$0xff]
    %v393 = vld [vmem:[#allocation2 + $0xd8] sm:$0xff]
    %v394 = vld [vmem:[#allocation2 + $0xe0] sm:$0xff]
    %v395 = vld [vmem:[#allocation2 + $0xe8] sm:$0xff]
    %v396 = vld [vmem:[#allocation2 + $0xf0] sm:$0xff]
    %v397 = vld [vmem:[#allocation2 + $0xf8] sm:$0xff]
    %v398 = vld [vmem:[#allocation5] sm:$0xff]
    %v399 = vld [vmem:[#allocation5 + $0x8] sm:$0xff]
    %v400 = vld [vmem:[#allocation5 + $0x10] sm:$0xff]
    %v401 = vld [vmem:[#allocation5 + $0x18] sm:$0xff]
    %v402 = vld [vmem:[#allocation5 + $0x20] sm:$0xff]
    %v403 = vld [vmem:[#allocation5 + $0x28] sm:$0xff]
    %v404 = vld [vmem:[#allocation5 + $0x30] sm:$0xff]
    %v405 = vld [vmem:[#allocation5 + $0x38] sm:$0xff]
    %v406 = vld [vmem:[#allocation5 + $0x40] sm:$0xff]
    %v407 = vld [vmem:[#allocation5 + $0x48] sm:$0xff]
    %v408 = vld [vmem:[#allocation5 + $0x50] sm:$0xff]
    %v409 = vld [vmem:[#allocation5 + $0x58] sm:$0xff]
    %v410 = vld [vmem:[#allocation5 + $0x60] sm:$0xff]
    %v411 = vld [vmem:[#allocation5 + $0x68] sm:$0xff]
    %v412 = vld [vmem:[#allocation5 + $0x70] sm:$0xff]
    %v413 = vld [vmem:[#allocation5 + $0x78] sm:$0xff]
    %v414 = vld [vmem:[#allocation5 + $0x80] sm:$0xff]
    %v415 = vld [vmem:[#allocation5 + $0x88] sm:$0xff]
    %v416 = vld [vmem:[#allocation5 + $0x90] sm:$0xff]
    %v417 = vld [vmem:[#allocation5 + $0x98] sm:$0xff]
    %v418 = vld [vmem:[#allocation5 + $0xa0] sm:$0xff]
    %v419 = vld [vmem:[#allocation5 + $0xa8] sm:$0xff]
    %v420 = vld [vmem:[#allocation5 + $0xb0] sm:$0xff]
    %v421 = vld [vmem:[#allocation5 + $0xb8] sm:$0xff]
    %v422 = vld [vmem:[#allocation5 + $0xc0] sm:$0xff]
    %v423 = vld [vmem:[#allocation5 + $0xc8] sm:$0xff]
    %v424 = vld [vmem:[#allocation5 + $0xd0] sm:$0xff]
    %v425 = vld [vmem:[#allocation5 + $0xd8] sm:$0xff]
    %v426 = vld [vmem:[#allocation5 + $0xe0] sm:$0xff]
    %v427 = vld [vmem:[#allocation5 + $0xe8] sm:$0xff]
    %v428 = vld [vmem:[#allocation5 + $0xf0] sm:$0xff]
    %v429 = vld [vmem:[#allocation5 + $0xf8] sm:$0xff]
    %v430 = vxor.u32 %v310, 2147483648
    %v431 = vxor.u32 %v311, 2147483648
    %v432 = vxor.u32 %v312, 2147483648
    %v433 = vmul.f32 %v430, 1.442695
    %v434 = vpow.pop %v433
    %v435 = vmul.f32 %v431, 1.442695
    %v436 = vpow.pop %v435
    %v437 = vmul.f32 %v432, 1.442695
    %v438 = vpow.pop %v437
    %v439 = vadd.f32 %v434, 1.0
    %v440 = vadd.f32 %v436, 1.0
    %v441 = vadd.f32 %v438, 1.0
    %v442 = vrcp.pop %v439
    %v443 = vmul.f32 1.0, %v442
    %v444 = vrcp.pop %v440
    %v445 = vmul.f32 1.0, %v444
    %v446 = vrcp.pop %v441
    %v447 = vmul.f32 1.0, %v446
    %v448 = vtanh.pop %v313
    %v449 = vmul.f32 %v445, 0.0
    %v450 = vmul.f32 %v443, %v448
    %v451 = vadd.f32 %v449, %v450
    %v452 = vtanh.pop %v451
    %v453 = vmul.f32 %v447, %v452
    %v454 = vpack.c.bf16 %v453, %v453
    %v487 = vunpack.c.l.b16 %v398
    %v488 = vunpack.c.h.b16 %v398
    %v489 = vunpack.c.l.b16 %v399
    %v490 = vunpack.c.h.b16 %v399
    %v491 = vunpack.c.l.b16 %v400
    %v492 = vunpack.c.h.b16 %v400
    %v493 = vunpack.c.l.b16 %v401
    %v494 = vunpack.c.h.b16 %v401
    %v495 = vunpack.c.l.b16 %v402
    %v496 = vunpack.c.h.b16 %v402
    %v497 = vunpack.c.l.b16 %v403
    %v498 = vunpack.c.h.b16 %v403
    %v499 = vunpack.c.l.b16 %v404
    %v500 = vunpack.c.h.b16 %v404
    %v501 = vunpack.c.l.b16 %v405
    %v502 = vunpack.c.h.b16 %v405
    %v503 = vunpack.c.l.b16 %v406
    %v504 = vunpack.c.h.b16 %v406
    %v505 = vunpack.c.l.b16 %v407
    %v506 = vunpack.c.h.b16 %v407
    %v507 = vunpack.c.l.b16 %v408
    %v508 = vunpack.c.h.b16 %v408
    %v509 = vunpack.c.l.b16 %v409
    %v510 = vunpack.c.h.b16 %v409
    %v511 = vunpack.c.l.b16 %v410
    %v512 = vunpack.c.h.b16 %v410
    %v513 = vunpack.c.l.b16 %v411
    %v514 = vunpack.c.h.b16 %v411
    %v515 = vunpack.c.l.b16 %v412
    %v516 = vunpack.c.h.b16 %v412
    %v517 = vunpack.c.l.b16 %v413
    %v518 = vunpack.c.h.b16 %v413
    %v519 = vunpack.c.l.b16 %v414
    %v520 = vunpack.c.h.b16 %v414
    %v521 = vunpack.c.l.b16 %v415
    %v522 = vunpack.c.h.b16 %v415
    %v523 = vunpack.c.l.b16 %v416
    %v524 = vunpack.c.h.b16 %v416
    %v525 = vunpack.c.l.b16 %v417
    %v526 = vunpack.c.h.b16 %v417
    %v527 = vunpack.c.l.b16 %v418
    %v528 = vunpack.c.h.b16 %v418
    %v529 = vunpack.c.l.b16 %v419
    %v530 = vunpack.c.h.b16 %v419
    %v531 = vunpack.c.l.b16 %v420
    %v532 = vunpack.c.h.b16 %v420
    %v533 = vunpack.c.l.b16 %v421
    %v534 = vunpack.c.h.b16 %v421
    %v535 = vunpack.c.l.b16 %v422
    %v536 = vunpack.c.h.b16 %v422
    %v537 = vunpack.c.l.b16 %v423
    %v538 = vunpack.c.h.b16 %v423
    %v539 = vunpack.c.l.b16 %v424
    %v540 = vunpack.c.h.b16 %v424
    %v541 = vunpack.c.l.b16 %v425
    %v542 = vunpack.c.h.b16 %v425
    %v543 = vunpack.c.l.b16 %v426
    %v544 = vunpack.c.h.b16 %v426
    %v545 = vunpack.c.l.b16 %v427
    %v546 = vunpack.c.h.b16 %v427
    %v547 = vunpack.c.l.b16 %v428
    %v548 = vunpack.c.h.b16 %v428
    %v549 = vunpack.c.l.b16 %v429
    %v550 = vunpack.c.h.b16 %v429
    %v551 = vpack.c.b16 %v491, %v487
    %v552 = vpack.c.b16 %v492, %v488
    %v553 = vpack.c.b16 %v493, %v489
    %v554 = vpack.c.b16 %v494, %v490
    %v555 = vpack.c.b16 %v499, %v495
    %v556 = vpack.c.b16 %v500, %v496
    %v557 = vpack.c.b16 %v501, %v497
    %v558 = vpack.c.b16 %v502, %v498
    %v559 = vpack.c.b16 %v507, %v503
    %v560 = vpack.c.b16 %v508, %v504
    %v561 = vpack.c.b16 %v509, %v505
    %v562 = vpack.c.b16 %v510, %v506
    %v563 = vpack.c.b16 %v515, %v511
    %v564 = vpack.c.b16 %v516, %v512
    %v565 = vpack.c.b16 %v517, %v513
    %v566 = vpack.c.b16 %v518, %v514
    %v567 = vpack.c.b16 %v523, %v519
    %v568 = vpack.c.b16 %v524, %v520
    %v569 = vpack.c.b16 %v525, %v521
    %v570 = vpack.c.b16 %v526, %v522
    %v571 = vpack.c.b16 %v531, %v527
    %v572 = vpack.c.b16 %v532, %v528
    %v573 = vpack.c.b16 %v533, %v529
    %v574 = vpack.c.b16 %v534, %v530
    %v575 = vpack.c.b16 %v539, %v535
    %v576 = vpack.c.b16 %v540, %v536
    %v577 = vpack.c.b16 %v541, %v537
    %v578 = vpack.c.b16 %v542, %v538
    %v579 = vpack.c.b16 %v547, %v543
    %v580 = vpack.c.b16 %v548, %v544
    %v581 = vpack.c.b16 %v549, %v545
    %v582 = vpack.c.b16 %v550, %v546
    %615 = vmatprep.subr.bf16.mxu0 %v552
    %616 = vmatpush1.bf16.msra.mxu0 %v551
    %617 = vmatprep.subr.bf16.mxu0 %v556
    %618 = vmatpush1.bf16.msra.mxu0 %v555
    %619 = vmatprep.subr.bf16.mxu0 %v560
    %620 = vmatpush1.bf16.msra.mxu0 %v559
    %621 = vmatprep.subr.bf16.mxu0 %v564
    %622 = vmatpush1.bf16.msra.mxu0 %v563
    %623 = vmatprep.subr.bf16.mxu0 %v568
    %624 = vmatpush1.bf16.msra.mxu0 %v567
    %625 = vmatprep.subr.bf16.mxu0 %v572
    %626 = vmatpush1.bf16.msra.mxu0 %v571
    %627 = vmatprep.subr.bf16.mxu0 %v576
    %628 = vmatpush1.bf16.msra.mxu0 %v575
    %629 = vmatprep.subr.bf16.mxu0 %v580
    %630 = vmatpush1.bf16.msra.mxu0 %v579
    %631 = vmatprep.subr.bf16.mxu0 0
    %632 = vmatpush1.bf16.msra.mxu0 0
    %633 = vmatprep.subr.bf16.mxu0 0
    %634 = vmatpush1.bf16.msra.mxu0 0
    %635 = vmatprep.subr.bf16.mxu0 0
    %636 = vmatpush1.bf16.msra.mxu0 0
    %637 = vmatprep.subr.bf16.mxu0 0
    %638 = vmatpush1.bf16.msra.mxu0 0
    %639 = vmatprep.subr.bf16.mxu0 0
    %640 = vmatpush1.bf16.msra.mxu0 0
    %641 = vmatprep.subr.bf16.mxu0 0
    %642 = vmatpush1.bf16.msra.mxu0 0
    %643 = vmatprep.subr.bf16.mxu0 0
    %644 = vmatpush1.bf16.msra.mxu0 0
    %645 = vmatprep.subr.bf16.mxu0 0
    %646 = vmatpush1.bf16.msra.mxu0 0
    %647 = vmatprep.mubr.bf16.mxu0 0
    %648 = vmatmul.mubr.bf16.gmra.mrb[0].mxu0 %v454
    %v649 = vpop.f32.mrb[0].mxu0
    %v650 = vadd.f32 0.0, %v649
    %v651 = vpop.f32.mrb[0].mxu0
    %v652 = vadd.f32 0.0, %v651
    %v653 = vpop.f32.mrb[0].mxu0
    %v654 = vpop.f32.mrb[0].mxu0
    %655 = vdwg.mxu0
    %656 = vmatprep.subr.bf16.mxu0 %v554
    %657 = vmatpush1.bf16.msra.mxu0 %v553
    %658 = vmatprep.subr.bf16.mxu0 %v558
    %659 = vmatpush1.bf16.msra.mxu0 %v557
    %660 = vmatprep.subr.bf16.mxu0 %v562
    %661 = vmatpush1.bf16.msra.mxu0 %v561
    %662 = vmatprep.subr.bf16.mxu0 %v566
    %663 = vmatpush1.bf16.msra.mxu0 %v565
    %664 = vmatprep.subr.bf16.mxu0 %v570
    %665 = vmatpush1.bf16.msra.mxu0 %v569
    %666 = vmatprep.subr.bf16.mxu0 %v574
    %667 = vmatpush1.bf16.msra.mxu0 %v573
    %668 = vmatprep.subr.bf16.mxu0 %v578
    %669 = vmatpush1.bf16.msra.mxu0 %v577
    %670 = vmatprep.subr.bf16.mxu0 %v582
    %671 = vmatpush1.bf16.msra.mxu0 %v581
    %672 = vmatprep.subr.bf16.mxu0 0
    %673 = vmatpush1.bf16.msra.mxu0 0
    %674 = vmatprep.subr.bf16.mxu0 0
    %675 = vmatpush1.bf16.msra.mxu0 0
    %676 = vmatprep.subr.bf16.mxu0 0
    %677 = vmatpush1.bf16.msra.mxu0 0
    %678 = vmatprep.subr.bf16.mxu0 0
    %679 = vmatpush1.bf16.msra.mxu0 0
    %680 = vmatprep.subr.bf16.mxu0 0
    %681 = vmatpush1.bf16.msra.mxu0 0
    %682 = vmatprep.subr.bf16.mxu0 0
    %683 = vmatpush1.bf16.msra.mxu0 0
    %684 = vmatprep.subr.bf16.mxu0 0
    %685 = vmatpush1.bf16.msra.mxu0 0
    %686 = vmatprep.subr.bf16.mxu0 0
    %687 = vmatpush1.bf16.msra.mxu0 0
    %688 = vmatprep.mubr.bf16.mxu0 0
    %689 = vmatmul.mubr.bf16.gmra.mrb[0].mxu0 %v454
    %v690 = vpop.f32.mrb[0].mxu0
    %v691 = vadd.f32 0.0, %v690
    %v692 = vpop.f32.mrb[0].mxu0
    %v693 = vadd.f32 0.0, %v692
    %v694 = vpop.f32.mrb[0].mxu0
    %v695 = vpop.f32.mrb[0].mxu0
    %696 = vdwg.mxu0
    %v729 = vunpack.c.l.b16 %v366
    %v730 = vunpack.c.h.b16 %v366
    %v731 = vunpack.c.l.b16 %v367
    %v732 = vunpack.c.h.b16 %v367
    %v733 = vunpack.c.l.b16 %v368
    %v734 = vunpack.c.h.b16 %v368
    %v735 = vunpack.c.l.b16 %v369
    %v736 = vunpack.c.h.b16 %v369
    %v737 = vunpack.c.l.b16 %v370
    %v738 = vunpack.c.h.b16 %v370
    %v739 = vunpack.c.l.b16 %v371
    %v740 = vunpack.c.h.b16 %v371
    %v741 = vunpack.c.l.b16 %v372
    %v742 = vunpack.c.h.b16 %v372
    %v743 = vunpack.c.l.b16 %v373
    %v744 = vunpack.c.h.b16 %v373
    %v745 = vunpack.c.l.b16 %v374
    %v746 = vunpack.c.h.b16 %v374
    %v747 = vunpack.c.l.b16 %v375
    %v748 = vunpack.c.h.b16 %v375
    %v749 = vunpack.c.l.b16 %v376
    %v750 = vunpack.c.h.b16 %v376
    %v751 = vunpack.c.l.b16 %v377
    %v752 = vunpack.c.h.b16 %v377
    %v753 = vunpack.c.l.b16 %v378
    %v754 = vunpack.c.h.b16 %v378
    %v755 = vunpack.c.l.b16 %v379
    %v756 = vunpack.c.h.b16 %v379
    %v757 = vunpack.c.l.b16 %v380
    %v758 = vunpack.c.h.b16 %v380
    %v759 = vunpack.c.l.b16 %v381
    %v760 = vunpack.c.h.b16 %v381
    %v761 = vunpack.c.l.b16 %v382
    %v762 = vunpack.c.h.b16 %v382
    %v763 = vunpack.c.l.b16 %v383
    %v764 = vunpack.c.h.b16 %v383
    %v765 = vunpack.c.l.b16 %v384
    %v766 = vunpack.c.h.b16 %v384
    %v767 = vunpack.c.l.b16 %v385
    %v768 = vunpack.c.h.b16 %v385
    %v769 = vunpack.c.l.b16 %v386
    %v770 = vunpack.c.h.b16 %v386
    %v771 = vunpack.c.l.b16 %v387
    %v772 = vunpack.c.h.b16 %v387
    %v773 = vunpack.c.l.b16 %v388
    %v774 = vunpack.c.h.b16 %v388
    %v775 = vunpack.c.l.b16 %v389
    %v776 = vunpack.c.h.b16 %v389
    %v777 = vunpack.c.l.b16 %v390
    %v778 = vunpack.c.h.b16 %v390
    %v779 = vunpack.c.l.b16 %v391
    %v780 = vunpack.c.h.b16 %v391
    %v781 = vunpack.c.l.b16 %v392
    %v782 = vunpack.c.h.b16 %v392
    %v783 = vunpack.c.l.b16 %v393
    %v784 = vunpack.c.h.b16 %v393
    %v785 = vunpack.c.l.b16 %v394
    %v786 = vunpack.c.h.b16 %v394
    %v787 = vunpack.c.l.b16 %v395
    %v788 = vunpack.c.h.b16 %v395
    %v789 = vunpack.c.l.b16 %v396
    %v790 = vunpack.c.h.b16 %v396
    %v791 = vunpack.c.l.b16 %v397
    %v792 = vunpack.c.h.b16 %v397
    %v793 = vpack.c.b16 %v733, %v729
    %v794 = vpack.c.b16 %v734, %v730
    %v795 = vpack.c.b16 %v735, %v731
    %v796 = vpack.c.b16 %v736, %v732
    %v797 = vpack.c.b16 %v741, %v737
    %v798 = vpack.c.b16 %v742, %v738
    %v799 = vpack.c.b16 %v743, %v739
    %v800 = vpack.c.b16 %v744, %v740
    %v801 = vpack.c.b16 %v749, %v745
    %v802 = vpack.c.b16 %v750, %v746
    %v803 = vpack.c.b16 %v751, %v747
    %v804 = vpack.c.b16 %v752, %v748
    %v805 = vpack.c.b16 %v757, %v753
    %v806 = vpack.c.b16 %v758, %v754
    %v807 = vpack.c.b16 %v759, %v755
    %v808 = vpack.c.b16 %v760, %v756
    %v809 = vpack.c.b16 %v765, %v761
    %v810 = vpack.c.b16 %v766, %v762
    %v811 = vpack.c.b16 %v767, %v763
    %v812 = vpack.c.b16 %v768, %v764
    %v813 = vpack.c.b16 %v773, %v769
    %v814 = vpack.c.b16 %v774, %v770
    %v815 = vpack.c.b16 %v775, %v771
    %v816 = vpack.c.b16 %v776, %v772
    %v817 = vpack.c.b16 %v781, %v777
    %v818 = vpack.c.b16 %v782, %v778
    %v819 = vpack.c.b16 %v783, %v779
    %v820 = vpack.c.b16 %v784, %v780
    %v821 = vpack.c.b16 %v789, %v785
    %v822 = vpack.c.b16 %v790, %v786
    %v823 = vpack.c.b16 %v791, %v787
    %v824 = vpack.c.b16 %v792, %v788
    %857 = vmatprep.subr.bf16.mxu0 %v794
    %858 = vmatpush1.bf16.msra.mxu0 %v793
    %859 = vmatprep.subr.bf16.mxu0 %v798
    %860 = vmatpush1.bf16.msra.mxu0 %v797
    %861 = vmatprep.subr.bf16.mxu0 %v802
    %862 = vmatpush1.bf16.msra.mxu0 %v801
    %863 = vmatprep.subr.bf16.mxu0 %v806
    %864 = vmatpush1.bf16.msra.mxu0 %v805
    %865 = vmatprep.subr.bf16.mxu0 %v810
    %866 = vmatpush1.bf16.msra.mxu0 %v809
    %867 = vmatprep.subr.bf16.mxu0 %v814
    %868 = vmatpush1.bf16.msra.mxu0 %v813
    %869 = vmatprep.subr.bf16.mxu0 %v818
    %870 = vmatpush1.bf16.msra.mxu0 %v817
    %871 = vmatprep.subr.bf16.mxu0 %v822
    %872 = vmatpush1.bf16.msra.mxu0 %v821
    %873 = vmatprep.subr.bf16.mxu0 0
    %874 = vmatpush1.bf16.msra.mxu0 0
    %875 = vmatprep.subr.bf16.mxu0 0
    %876 = vmatpush1.bf16.msra.mxu0 0
    %877 = vmatprep.subr.bf16.mxu0 0
    %878 = vmatpush1.bf16.msra.mxu0 0
    %879 = vmatprep.subr.bf16.mxu0 0
    %880 = vmatpush1.bf16.msra.mxu0 0
    %881 = vmatprep.subr.bf16.mxu0 0
    %882 = vmatpush1.bf16.msra.mxu0 0
    %883 = vmatprep.subr.bf16.mxu0 0
    %884 = vmatpush1.bf16.msra.mxu0 0
    %885 = vmatprep.subr.bf16.mxu0 0
    %886 = vmatpush1.bf16.msra.mxu0 0
    %887 = vmatprep.subr.bf16.mxu0 0
    %888 = vmatpush1.bf16.msra.mxu0 0
    %889 = vmatprep.mubr.bf16.mxu0 0
    %890 = vmatmul.mubr.bf16.gmra.mrb[0].mxu0 %v454
    %v891 = vpop.f32.mrb[0].mxu0
    %v892 = vadd.f32 %v650, %v891
    %v893 = vpop.f32.mrb[0].mxu0
    %v894 = vadd.f32 %v652, %v893
    %v895 = vpop.f32.mrb[0].mxu0
    %v896 = vpop.f32.mrb[0].mxu0
    %897 = vdwg.mxu0
    %898 = vmatprep.subr.bf16.mxu0 %v796
    %899 = vmatpush1.bf16.msra.mxu0 %v795
    %900 = vmatprep.subr.bf16.mxu0 %v800
    %901 = vmatpush1.bf16.msra.mxu0 %v799
    %902 = vmatprep.subr.bf16.mxu0 %v804
    %903 = vmatpush1.bf16.msra.mxu0 %v803
    %904 = vmatprep.subr.bf16.mxu0 %v808
    %905 = vmatpush1.bf16.msra.mxu0 %v807
    %906 = vmatprep.subr.bf16.mxu0 %v812
    %907 = vmatpush1.bf16.msra.mxu0 %v811
    %908 = vmatprep.subr.bf16.mxu0 %v816
    %909 = vmatpush1.bf16.msra.mxu0 %v815
    %910 = vmatprep.subr.bf16.mxu0 %v820
    %911 = vmatpush1.bf16.msra.mxu0 %v819
    %912 = vmatprep.subr.bf16.mxu0 %v824
    %913 = vmatpush1.bf16.msra.mxu0 %v823
    %914 = vmatprep.subr.bf16.mxu0 0
    %915 = vmatpush1.bf16.msra.mxu0 0
    %916 = vmatprep.subr.bf16.mxu0 0
    %917 = vmatpush1.bf16.msra.mxu0 0
    %918 = vmatprep.subr.bf16.mxu0 0
    %919 = vmatpush1.bf16.msra.mxu0 0
    %920 = vmatprep.subr.bf16.mxu0 0
    %921 = vmatpush1.bf16.msra.mxu0 0
    %922 = vmatprep.subr.bf16.mxu0 0
    %923 = vmatpush1.bf16.msra.mxu0 0
    %924 = vmatprep.subr.bf16.mxu0 0
    %925 = vmatpush1.bf16.msra.mxu0 0
    %926 = vmatprep.subr.bf16.mxu0 0
    %927 = vmatpush1.bf16.msra.mxu0 0
    %928 = vmatprep.subr.bf16.mxu0 0
    %929 = vmatpush1.bf16.msra.mxu0 0
    %930 = vmatprep.mubr.bf16.mxu0 0
    %931 = vmatmul.mubr.bf16.gmra.mrb[0].mxu0 %v454
    %v932 = vpop.f32.mrb[0].mxu0
    %v933 = vadd.f32 %v691, %v932
    %v934 = vpop.f32.mrb[0].mxu0
    %v935 = vadd.f32 %v693, %v934
    %v936 = vpop.f32.mrb[0].mxu0
    %v937 = vpop.f32.mrb[0].mxu0
    %938 = vdwg.mxu0
    %v943 = vrot.slane %v892, 6
    %v944 = vrot.slane %v894, 6
    %v945 = vrot.slane %v933, 6
    %v946 = vrot.slane %v935, 6
    %v951 = vadd.f32 %v326, %v943
    %v952 = vadd.f32 %v327, %v944
    %v953 = vadd.f32 %v328, %v945
    %v954 = vadd.f32 %v329, %v946
    %v955 = vxor.u32 %v951, 2147483648
    %v956 = vxor.u32 %v952, 2147483648
    %v957 = vxor.u32 %v953, 2147483648
    %v958 = vmul.f32 %v955, 1.442695
    %v959 = vpow.pop %v958
    %v960 = vmul.f32 %v956, 1.442695
    %v961 = vpow.pop %v960
    %v962 = vmul.f32 %v957, 1.442695
    %v963 = vpow.pop %v962
    %v964 = vadd.f32 %v959, 1.0
    %v965 = vadd.f32 %v961, 1.0
    %v966 = vadd.f32 %v963, 1.0
    %v967 = vrcp.pop %v964
    %v968 = vmul.f32 1.0, %v967
    %v969 = vrcp.pop %v965
    %v970 = vmul.f32 1.0, %v969
    %v971 = vrcp.pop %v966
    %v972 = vmul.f32 1.0, %v971
    %v973 = vtanh.pop %v954
    %v975 = vrot.slane %v451, 6
    %v977 = vmul.f32 %v970, %v975
    %v978 = vmul.f32 %v968, %v973
    %v979 = vadd.f32 %v977, %v978
    %v980 = vtanh.pop %v979
    %v981 = vmul.f32 %v972, %v980
    %v983 = vrot.slane %v981, 2
    %v985 = vmax.f32 %v453, %v983
    %v986 = vpack.c.bf16 %v981, %v981
    %v988 = vrot.slane %v986, 1
    %990 = vmatprep.subr.bf16.mxu0 %v552
    %991 = vmatpush1.bf16.msra.mxu0 %v551
    %992 = vmatprep.subr.bf16.mxu0 %v556
    %993 = vmatpush1.bf16.msra.mxu0 %v555
    %994 = vmatprep.subr.bf16.mxu0 %v560
    %995 = vmatpush1.bf16.msra.mxu0 %v559
    %996 = vmatprep.subr.bf16.mxu0 %v564
    %997 = vmatpush1.bf16.msra.mxu0 %v563
    %998 = vmatprep.subr.bf16.mxu0 %v568
    %999 = vmatpush1.bf16.msra.mxu0 %v567
    %1000 = vmatprep.subr.bf16.mxu0 %v572
    %1001 = vmatpush1.bf16.msra.mxu0 %v571
    %1002 = vmatprep.subr.bf16.mxu0 %v576
    %1003 = vmatpush1.bf16.msra.mxu0 %v575
    %1004 = vmatprep.subr.bf16.mxu0 %v580
    %1005 = vmatpush1.bf16.msra.mxu0 %v579
    %1006 = vmatprep.subr.bf16.mxu0 0
    %1007 = vmatpush1.bf16.msra.mxu0 0
    %1008 = vmatprep.subr.bf16.mxu0 0
    %1009 = vmatpush1.bf16.msra.mxu0 0
    %1010 = vmatprep.subr.bf16.mxu0 0
    %1011 = vmatpush1.bf16.msra.mxu0 0
    %1012 = vmatprep.subr.bf16.mxu0 0
    %1013 = vmatpush1.bf16.msra.mxu0 0
    %1014 = vmatprep.subr.bf16.mxu0 0
    %1015 = vmatpush1.bf16.msra.mxu0 0
    %1016 = vmatprep.subr.bf16.mxu0 0
    %1017 = vmatpush1.bf16.msra.mxu0 0
    %1018 = vmatprep.subr.bf16.mxu0 0
    %1019 = vmatpush1.bf16.msra.mxu0 0
    %1020 = vmatprep.subr.bf16.mxu0 0
    %1021 = vmatpush1.bf16.msra.mxu0 0
    %1022 = vmatprep.mubr.bf16.mxu0 0
    %1023 = vmatmul.mubr.bf16.gmra.mrb[0].mxu0 %v988
    %v1024 = vpop.f32.mrb[0].mxu0
    %v1025 = vadd.f32 0.0, %v1024
    %v1026 = vpop.f32.mrb[0].mxu0
    %v1027 = vadd.f32 0.0, %v1026
    %v1028 = vpop.f32.mrb[0].mxu0
    %v1029 = vpop.f32.mrb[0].mxu0
    %1030 = vdwg.mxu0
    %1031 = vmatprep.subr.bf16.mxu0 %v554
    %1032 = vmatpush1.bf16.msra.mxu0 %v553
    %1033 = vmatprep.subr.bf16.mxu0 %v558
    %1034 = vmatpush1.bf16.msra.mxu0 %v557
    %1035 = vmatprep.subr.bf16.mxu0 %v562
    %1036 = vmatpush1.bf16.msra.mxu0 %v561
    %1037 = vmatprep.subr.bf16.mxu0 %v566
    %1038 = vmatpush1.bf16.msra.mxu0 %v565
    %1039 = vmatprep.subr.bf16.mxu0 %v570
    %1040 = vmatpush1.bf16.msra.mxu0 %v569
    %1041 = vmatprep.subr.bf16.mxu0 %v574
    %1042 = vmatpush1.bf16.msra.mxu0 %v573
    %1043 = vmatprep.subr.bf16.mxu0 %v578
    %1044 = vmatpush1.bf16.msra.mxu0 %v577
    %1045 = vmatprep.subr.bf16.mxu0 %v582
    %1046 = vmatpush1.bf16.msra.mxu0 %v581
    %1047 = vmatprep.subr.bf16.mxu0 0
    %1048 = vmatpush1.bf16.msra.mxu0 0
    %1049 = vmatprep.subr.bf16.mxu0 0
    %1050 = vmatpush1.bf16.msra.mxu0 0
    %1051 = vmatprep.subr.bf16.mxu0 0
    %1052 = vmatpush1.bf16.msra.mxu0 0
    %1053 = vmatprep.subr.bf16.mxu0 0
    %1054 = vmatpush1.bf16.msra.mxu0 0
    %1055 = vmatprep.subr.bf16.mxu0 0
    %1056 = vmatpush1.bf16.msra.mxu0 0
    %1057 = vmatprep.subr.bf16.mxu0 0
    %1058 = vmatpush1.bf16.msra.mxu0 0
    %1059 = vmatprep.subr.bf16.mxu0 0
    %1060 = vmatpush1.bf16.msra.mxu0 0
    %1061 = vmatprep.subr.bf16.mxu0 0
    %1062 = vmatpush1.bf16.msra.mxu0 0
    %1063 = vmatprep.mubr.bf16.mxu0 0
    %1064 = vmatmul.mubr.bf16.gmra.mrb[0].mxu0 %v988
    %v1065 = vpop.f32.mrb[0].mxu0
    %v1066 = vadd.f32 0.0, %v1065
    %v1067 = vpop.f32.mrb[0].mxu0
    %v1068 = vadd.f32 0.0, %v1067
    %v1069 = vpop.f32.mrb[0].mxu0
    %v1070 = vpop.f32.mrb[0].mxu0
    %1071 = vdwg.mxu0
    %1072 = vmatprep.subr.bf16.mxu0 %v794
    %1073 = vmatpush1.bf16.msra.mxu0 %v793
    %1074 = vmatprep.subr.bf16.mxu0 %v798
    %1075 = vmatpush1.bf16.msra.mxu0 %v797
    %1076 = vmatprep.subr.bf16.mxu0 %v802
    %1077 = vmatpush1.bf16.msra.mxu0 %v801
    %1078 = vmatprep.subr.bf16.mxu0 %v806
    %1079 = vmatpush1.bf16.msra.mxu0 %v805
    %1080 = vmatprep.subr.bf16.mxu0 %v810
    %1081 = vmatpush1.bf16.msra.mxu0 %v809
    %1082 = vmatprep.subr.bf16.mxu0 %v814
    %1083 = vmatpush1.bf16.msra.mxu0 %v813
    %1084 = vmatprep.subr.bf16.mxu0 %v818
    %1085 = vmatpush1.bf16.msra.mxu0 %v817
    %1086 = vmatprep.subr.bf16.mxu0 %v822
    %1087 = vmatpush1.bf16.msra.mxu0 %v821
    %1088 = vmatprep.subr.bf16.mxu0 0
    %1089 = vmatpush1.bf16.msra.mxu0 0
    %1090 = vmatprep.subr.bf16.mxu0 0
    %1091 = vmatpush1.bf16.msra.mxu0 0
    %1092 = vmatprep.subr.bf16.mxu0 0
    %1093 = vmatpush1.bf16.msra.mxu0 0
    %1094 = vmatprep.subr.bf16.mxu0 0
    %1095 = vmatpush1.bf16.msra.mxu0 0
    %1096 = vmatprep.subr.bf16.mxu0 0
    %1097 = vmatpush1.bf16.msra.mxu0 0
    %1098 = vmatprep.subr.bf16.mxu0 0
    %1099 = vmatpush1.bf16.msra.mxu0 0
    %1100 = vmatprep.subr.bf16.mxu0 0
    %1101 = vmatpush1.bf16.msra.mxu0 0
    %1102 = vmatprep.subr.bf16.mxu0 0
    %1103 = vmatpush1.bf16.msra.mxu0 0
    %1104 = vmatprep.mubr.bf16.mxu0 0
    %1105 = vmatmul.mubr.bf16.gmra.mrb[0].mxu0 %v988
    %v1106 = vpop.f32.mrb[0].mxu0
    %v1107 = vadd.f32 %v1025, %v1106
    %v1108 = vpop.f32.mrb[0].mxu0
    %v1109 = vadd.f32 %v1027, %v1108
    %v1110 = vpop.f32.mrb[0].mxu0
    %v1111 = vpop.f32.mrb[0].mxu0
    %1112 = vdwg.mxu0
    %1113 = vmatprep.subr.bf16.mxu0 %v796
    %1114 = vmatpush1.bf16.msra.mxu0 %v795
    %1115 = vmatprep.subr.bf16.mxu0 %v800
    %1116 = vmatpush1.bf16.msra.mxu0 %v799
    %1117 = vmatprep.subr.bf16.mxu0 %v804
    %1118 = vmatpush1.bf16.msra.mxu0 %v803
    %1119 = vmatprep.subr.bf16.mxu0 %v808
    %1120 = vmatpush1.bf16.msra.mxu0 %v807
    %1121 = vmatprep.subr.bf16.mxu0 %v812
    %1122 = vmatpush1.bf16.msra.mxu0 %v811
    %1123 = vmatprep.subr.bf16.mxu0 %v816
    %1124 = vmatpush1.bf16.msra.mxu0 %v815
    %1125 = vmatprep.subr.bf16.mxu0 %v820
    %1126 = vmatpush1.bf16.msra.mxu0 %v819
    %1127 = vmatprep.subr.bf16.mxu0 %v824
    %1128 = vmatpush1.bf16.msra.mxu0 %v823
    %1129 = vmatprep.subr.bf16.mxu0 0
    %1130 = vmatpush1.bf16.msra.mxu0 0
    %1131 = vmatprep.subr.bf16.mxu0 0
    %1132 = vmatpush1.bf16.msra.mxu0 0
    %1133 = vmatprep.subr.bf16.mxu0 0
    %1134 = vmatpush1.bf16.msra.mxu0 0
    %1135 = vmatprep.subr.bf16.mxu0 0
    %1136 = vmatpush1.bf16.msra.mxu0 0
    %1137 = vmatprep.subr.bf16.mxu0 0
    %1138 = vmatpush1.bf16.msra.mxu0 0
    %1139 = vmatprep.subr.bf16.mxu0 0
    %1140 = vmatpush1.bf16.msra.mxu0 0
    %1141 = vmatprep.subr.bf16.mxu0 0
    %1142 = vmatpush1.bf16.msra.mxu0 0
    %1143 = vmatprep.subr.bf16.mxu0 0
    %1144 = vmatpush1.bf16.msra.mxu0 0
    %1145 = vmatprep.mubr.bf16.mxu0 0
    %1146 = vmatmul.mubr.bf16.gmra.mrb[0].mxu0 %v988
    %v1147 = vpop.f32.mrb[0].mxu0
    %v1148 = vadd.f32 %v1066, %v1147
    %v1149 = vpop.f32.mrb[0].mxu0
    %v1150 = vadd.f32 %v1068, %v1149
    %v1151 = vpop.f32.mrb[0].mxu0
    %v1152 = vpop.f32.mrb[0].mxu0
    %1153 = vdwg.mxu0
    %v1158 = vrot.slane %v1107, 4
    %v1159 = vrot.slane %v1109, 4
    %v1160 = vrot.slane %v1148, 4
    %v1161 = vrot.slane %v1150, 4
    %v1166 = vadd.f32 %v310, %v1158
    %v1167 = vadd.f32 %v311, %v1159
    %v1168 = vadd.f32 %v312, %v1160
    %v1169 = vadd.f32 %v313, %v1161
    %v1170 = vxor.u32 %v1166, 2147483648
    %v1171 = vxor.u32 %v1167, 2147483648
    %v1172 = vxor.u32 %v1168, 2147483648
    %v1173 = vmul.f32 %v1170, 1.442695
    %v1174 = vpow.pop %v1173
    %v1175 = vmul.f32 %v1171, 1.442695
    %v1176 = vpow.pop %v1175
    %v1177 = vmul.f32 %v1172, 1.442695
    %v1178 = vpow.pop %v1177
    %v1179 = vadd.f32 %v1174, 1.0
    %v1180 = vadd.f32 %v1176, 1.0
    %v1181 = vadd.f32 %v1178, 1.0
    %v1182 = vrcp.pop %v1179
    %v1183 = vmul.f32 1.0, %v1182
    %v1184 = vrcp.pop %v1180
    %v1185 = vmul.f32 1.0, %v1184
    %v1186 = vrcp.pop %v1181
    %v1187 = vmul.f32 1.0, %v1186
    %v1188 = vtanh.pop %v1169
    %v1190 = vrot.slane %v979, 6
    %v1192 = vmul.f32 %v1185, %v1190
    %v1193 = vmul.f32 %v1183, %v1188
    %v1194 = vadd.f32 %v1192, %v1193
    %v1195 = vtanh.pop %v1194
    %v1196 = vmul.f32 %v1187, %v1195
    %v1198 = vrot.slane %v1196, 4
    %v1200 = vmax.f32 %v985, %v1198
    %v1201 = vpack.c.bf16 %v1196, %v1196
    %v1203 = vrot.slane %v1201, 2
    %1205 = vmatprep.subr.bf16.mxu0 %v552
    %1206 = vmatpush1.bf16.msra.mxu0 %v551
    %1207 = vmatprep.subr.bf16.mxu0 %v556
    %1208 = vmatpush1.bf16.msra.mxu0 %v555
    %1209 = vmatprep.subr.bf16.mxu0 %v560
    %1210 = vmatpush1.bf16.msra.mxu0 %v559
    %1211 = vmatprep.subr.bf16.mxu0 %v564
    %1212 = vmatpush1.bf16.msra.mxu0 %v563
    %1213 = vmatprep.subr.bf16.mxu0 %v568
    %1214 = vmatpush1.bf16.msra.mxu0 %v567
    %1215 = vmatprep.subr.bf16.mxu0 %v572
    %1216 = vmatpush1.bf16.msra.mxu0 %v571
    %1217 = vmatprep.subr.bf16.mxu0 %v576
    %1218 = vmatpush1.bf16.msra.mxu0 %v575
    %1219 = vmatprep.subr.bf16.mxu0 %v580
    %1220 = vmatpush1.bf16.msra.mxu0 %v579
    %1221 = vmatprep.subr.bf16.mxu0 0
    %1222 = vmatpush1.bf16.msra.mxu0 0
    %1223 = vmatprep.subr.bf16.mxu0 0
    %1224 = vmatpush1.bf16.msra.mxu0 0
    %1225 = vmatprep.subr.bf16.mxu0 0
    %1226 = vmatpush1.bf16.msra.mxu0 0
    %1227 = vmatprep.subr.bf16.mxu0 0
    %1228 = vmatpush1.bf16.msra.mxu0 0
    %1229 = vmatprep.subr.bf16.mxu0 0
    %1230 = vmatpush1.bf16.msra.mxu0 0
    %1231 = vmatprep.subr.bf16.mxu0 0
    %1232 = vmatpush1.bf16.msra.mxu0 0
    %1233 = vmatprep.subr.bf16.mxu0 0
    %1234 = vmatpush1.bf16.msra.mxu0 0
    %1235 = vmatprep.subr.bf16.mxu0 0
    %1236 = vmatpush1.bf16.msra.mxu0 0
    %1237 = vmatprep.mubr.bf16.mxu0 0
    %1238 = vmatmul.mubr.bf16.gmra.mrb[0].mxu0 %v1203
    %v1239 = vpop.f32.mrb[0].mxu0
    %v1240 = vadd.f32 0.0, %v1239
    %v1241 = vpop.f32.mrb[0].mxu0
    %v1242 = vadd.f32 0.0, %v1241
    %v1243 = vpop.f32.mrb[0].mxu0
    %v1244 = vpop.f32.mrb[0].mxu0
    %1245 = vdwg.mxu0
    %1246 = vmatprep.subr.bf16.mxu0 %v554
    %1247 = vmatpush1.bf16.msra.mxu0 %v553
    %1248 = vmatprep.subr.bf16.mxu0 %v558
    %1249 = vmatpush1.bf16.msra.mxu0 %v557
    %1250 = vmatprep.subr.bf16.mxu0 %v562
    %1251 = vmatpush1.bf16.msra.mxu0 %v561
    %1252 = vmatprep.subr.bf16.mxu0 %v566
    %1253 = vmatpush1.bf16.msra.mxu0 %v565
    %1254 = vmatprep.subr.bf16.mxu0 %v570
    %1255 = vmatpush1.bf16.msra.mxu0 %v569
    %1256 = vmatprep.subr.bf16.mxu0 %v574
    %1257 = vmatpush1.bf16.msra.mxu0 %v573
    %1258 = vmatprep.subr.bf16.mxu0 %v578
    %1259 = vmatpush1.bf16.msra.mxu0 %v577
    %1260 = vmatprep.subr.bf16.mxu0 %v582
    %1261 = vmatpush1.bf16.msra.mxu0 %v581
    %1262 = vmatprep.subr.bf16.mxu0 0
    %1263 = vmatpush1.bf16.msra.mxu0 0
    %1264 = vmatprep.subr.bf16.mxu0 0
    %1265 = vmatpush1.bf16.msra.mxu0 0
    %1266 = vmatprep.subr.bf16.mxu0 0
    %1267 = vmatpush1.bf16.msra.mxu0 0
    %1268 = vmatprep.subr.bf16.mxu0 0
    %1269 = vmatpush1.bf16.msra.mxu0 0
    %1270 = vmatprep.subr.bf16.mxu0 0
    %1271 = vmatpush1.bf16.msra.mxu0 0
    %1272 = vmatprep.subr.bf16.mxu0 0
    %1273 = vmatpush1.bf16.msra.mxu0 0
    %1274 = vmatprep.subr.bf16.mxu0 0
    %1275 = vmatpush1.bf16.msra.mxu0 0
    %1276 = vmatprep.subr.bf16.mxu0 0
    %1277 = vmatpush1.bf16.msra.mxu0 0
    %1278 = vmatprep.mubr.bf16.mxu0 0
    %1279 = vmatmul.mubr.bf16.gmra.mrb[0].mxu0 %v1203
    %v1280 = vpop.f32.mrb[0].mxu0
    %v1281 = vadd.f32 0.0, %v1280
    %v1282 = vpop.f32.mrb[0].mxu0
    %v1283 = vadd.f32 0.0, %v1282
    %v1284 = vpop.f32.mrb[0].mxu0
    %v1285 = vpop.f32.mrb[0].mxu0
    %1286 = vdwg.mxu0
    %1287 = vmatprep.subr.bf16.mxu0 %v794
    %1288 = vmatpush1.bf16.msra.mxu0 %v793
    %1289 = vmatprep.subr.bf16.mxu0 %v798
    %1290 = vmatpush1.bf16.msra.mxu0 %v797
    %1291 = vmatprep.subr.bf16.mxu0 %v802
    %1292 = vmatpush1.bf16.msra.mxu0 %v801
    %1293 = vmatprep.subr.bf16.mxu0 %v806
    %1294 = vmatpush1.bf16.msra.mxu0 %v805
    %1295 = vmatprep.subr.bf16.mxu0 %v810
    %1296 = vmatpush1.bf16.msra.mxu0 %v809
    %1297 = vmatprep.subr.bf16.mxu0 %v814
    %1298 = vmatpush1.bf16.msra.mxu0 %v813
    %1299 = vmatprep.subr.bf16.mxu0 %v818
    %1300 = vmatpush1.bf16.msra.mxu0 %v817
    %1301 = vmatprep.subr.bf16.mxu0 %v822
    %1302 = vmatpush1.bf16.msra.mxu0 %v821
    %1303 = vmatprep.subr.bf16.mxu0 0
    %1304 = vmatpush1.bf16.msra.mxu0 0
    %1305 = vmatprep.subr.bf16.mxu0 0
    %1306 = vmatpush1.bf16.msra.mxu0 0
    %1307 = vmatprep.subr.bf16.mxu0 0
    %1308 = vmatpush1.bf16.msra.mxu0 0
    %1309 = vmatprep.subr.bf16.mxu0 0
    %1310 = vmatpush1.bf16.msra.mxu0 0
    %1311 = vmatprep.subr.bf16.mxu0 0
    %1312 = vmatpush1.bf16.msra.mxu0 0
    %1313 = vmatprep.subr.bf16.mxu0 0
    %1314 = vmatpush1.bf16.msra.mxu0 0
    %1315 = vmatprep.subr.bf16.mxu0 0
    %1316 = vmatpush1.bf16.msra.mxu0 0
    %1317 = vmatprep.subr.bf16.mxu0 0
    %1318 = vmatpush1.bf16.msra.mxu0 0
    %1319 = vmatprep.mubr.bf16.mxu0 0
    %1320 = vmatmul.mubr.bf16.gmra.mrb[0].mxu0 %v1203
    %v1321 = vpop.f32.mrb[0].mxu0
    %v1322 = vadd.f32 %v1240, %v1321
    %v1323 = vpop.f32.mrb[0].mxu0
    %v1324 = vadd.f32 %v1242, %v1323
    %v1325 = vpop.f32.mrb[0].mxu0
    %v1326 = vpop.f32.mrb[0].mxu0
    %1327 = vdwg.mxu0
    %1328 = vmatprep.subr.bf16.mxu0 %v796
    %1329 = vmatpush1.bf16.msra.mxu0 %v795
    %1330 = vmatprep.subr.bf16.mxu0 %v800
    %1331 = vmatpush1.bf16.msra.mxu0 %v799
    %1332 = vmatprep.subr.bf16.mxu0 %v804
    %1333 = vmatpush1.bf16.msra.mxu0 %v803
    %1334 = vmatprep.subr.bf16.mxu0 %v808
    %1335 = vmatpush1.bf16.msra.mxu0 %v807
    %1336 = vmatprep.subr.bf16.mxu0 %v812
    %1337 = vmatpush1.bf16.msra.mxu0 %v811
    %1338 = vmatprep.subr.bf16.mxu0 %v816
    %1339 = vmatpush1.bf16.msra.mxu0 %v815
    %1340 = vmatprep.subr.bf16.mxu0 %v820
    %1341 = vmatpush1.bf16.msra.mxu0 %v819
    %1342 = vmatprep.subr.bf16.mxu0 %v824
    %1343 = vmatpush1.bf16.msra.mxu0 %v823
    %1344 = vmatprep.subr.bf16.mxu0 0
    %1345 = vmatpush1.bf16.msra.mxu0 0
    %1346 = vmatprep.subr.bf16.mxu0 0
    %1347 = vmatpush1.bf16.msra.mxu0 0
    %1348 = vmatprep.subr.bf16.mxu0 0
    %1349 = vmatpush1.bf16.msra.mxu0 0
    %1350 = vmatprep.subr.bf16.mxu0 0
    %1351 = vmatpush1.bf16.msra.mxu0 0
    %1352 = vmatprep.subr.bf16.mxu0 0
    %1353 = vmatpush1.bf16.msra.mxu0 0
    %1354 = vmatprep.subr.bf16.mxu0 0
    %1355 = vmatpush1.bf16.msra.mxu0 0
    %1356 = vmatprep.subr.bf16.mxu0 0
    %1357 = vmatpush1.bf16.msra.mxu0 0
    %1358 = vmatprep.subr.bf16.mxu0 0
    %1359 = vmatpush1.bf16.msra.mxu0 0
    %1360 = vmatprep.mubr.bf16.mxu0 0
    %1361 = vmatmul.mubr.bf16.gmra.mrb[0].mxu0 %v1203
    %v1362 = vpop.f32.mrb[0].mxu0
    %v1363 = vadd.f32 %v1281, %v1362
    %v1364 = vpop.f32.mrb[0].mxu0
    %v1365 = vadd.f32 %v1283, %v1364
    %v1366 = vpop.f32.mrb[0].mxu0
    %v1367 = vpop.f32.mrb[0].mxu0
    %1368 = vdwg.mxu0
    %v1373 = vrot.slane %v1322, 2
    %v1374 = vrot.slane %v1324, 2
    %v1375 = vrot.slane %v1363, 2
    %v1376 = vrot.slane %v1365, 2
    %v1381 = vadd.f32 %v326, %v1373
    %v1382 = vadd.f32 %v327, %v1374
    %v1383 = vadd.f32 %v328, %v1375
    %v1384 = vadd.f32 %v329, %v1376
    %v1385 = vxor.u32 %v1381, 2147483648
    %v1386 = vxor.u32 %v1382, 2147483648
    %v1387 = vxor.u32 %v1383, 2147483648
    %v1388 = vmul.f32 %v1385, 1.442695
    %v1389 = vpow.pop %v1388
    %v1390 = vmul.f32 %v1386, 1.442695
    %v1391 = vpow.pop %v1390
    %v1392 = vmul.f32 %v1387, 1.442695
    %v1393 = vpow.pop %v1392
    %v1394 = vadd.f32 %v1389, 1.0
    %v1395 = vadd.f32 %v1391, 1.0
    %v1396 = vadd.f32 %v1393, 1.0
    %v1397 = vrcp.pop %v1394
    %v1398 = vmul.f32 1.0, %v1397
    %v1399 = vrcp.pop %v1395
    %v1400 = vmul.f32 1.0, %v1399
    %v1401 = vrcp.pop %v1396
    %v1402 = vmul.f32 1.0, %v1401
    %v1403 = vtanh.pop %v1384
    %v1405 = vrot.slane %v1194, 6
    %v1407 = vmul.f32 %v1400, %v1405
    %v1408 = vmul.f32 %v1398, %v1403
    %v1409 = vadd.f32 %v1407, %v1408
    %v1410 = vtanh.pop %v1409
    %v1411 = vmul.f32 %v1402, %v1410
    %v1413 = vrot.slane %v1411, 6
    %v1415 = vmax.f32 %v1200, %v1413
    %v1416 = vpack.c.bf16 %v1411, %v1411
    %v1418 = vrot.slane %v1416, 3
    %1420 = vmatprep.subr.bf16.mxu0 %v552
    %1421 = vmatpush1.bf16.msra.mxu0 %v551
    %1422 = vmatprep.subr.bf16.mxu0 %v556
    %1423 = vmatpush1.bf16.msra.mxu0 %v555
    %1424 = vmatprep.subr.bf16.mxu0 %v560
    %1425 = vmatpush1.bf16.msra.mxu0 %v559
    %1426 = vmatprep.subr.bf16.mxu0 %v564
    %1427 = vmatpush1.bf16.msra.mxu0 %v563
    %1428 = vmatprep.subr.bf16.mxu0 %v568
    %1429 = vmatpush1.bf16.msra.mxu0 %v567
    %1430 = vmatprep.subr.bf16.mxu0 %v572
    %1431 = vmatpush1.bf16.msra.mxu0 %v571
    %1432 = vmatprep.subr.bf16.mxu0 %v576
    %1433 = vmatpush1.bf16.msra.mxu0 %v575
    %1434 = vmatprep.subr.bf16.mxu0 %v580
    %1435 = vmatpush1.bf16.msra.mxu0 %v579
    %1436 = vmatprep.subr.bf16.mxu0 0
    %1437 = vmatpush1.bf16.msra.mxu0 0
    %1438 = vmatprep.subr.bf16.mxu0 0
    %1439 = vmatpush1.bf16.msra.mxu0 0
    %1440 = vmatprep.subr.bf16.mxu0 0
    %1441 = vmatpush1.bf16.msra.mxu0 0
    %1442 = vmatprep.subr.bf16.mxu0 0
    %1443 = vmatpush1.bf16.msra.mxu0 0
    %1444 = vmatprep.subr.bf16.mxu0 0
    %1445 = vmatpush1.bf16.msra.mxu0 0
    %1446 = vmatprep.subr.bf16.mxu0 0
    %1447 = vmatpush1.bf16.msra.mxu0 0
    %1448 = vmatprep.subr.bf16.mxu0 0
    %1449 = vmatpush1.bf16.msra.mxu0 0
    %1450 = vmatprep.subr.bf16.mxu0 0
    %1451 = vmatpush1.bf16.msra.mxu0 0
    %1452 = vmatprep.mubr.bf16.mxu0 0
    %1453 = vmatmul.mubr.bf16.gmra.mrb[0].mxu0 %v1418
    %v1454 = vpop.f32.mrb[0].mxu0
    %v1455 = vadd.f32 0.0, %v1454
    %v1456 = vpop.f32.mrb[0].mxu0
    %v1457 = vadd.f32 0.0, %v1456
    %v1458 = vpop.f32.mrb[0].mxu0
    %v1459 = vpop.f32.mrb[0].mxu0
    %1460 = vdwg.mxu0
    %1461 = vmatprep.subr.bf16.mxu0 %v554
    %1462 = vmatpush1.bf16.msra.mxu0 %v553
    %1463 = vmatprep.subr.bf16.mxu0 %v558
    %1464 = vmatpush1.bf16.msra.mxu0 %v557
    %1465 = vmatprep.subr.bf16.mxu0 %v562
    %1466 = vmatpush1.bf16.msra.mxu0 %v561
    %1467 = vmatprep.subr.bf16.mxu0 %v566
    %1468 = vmatpush1.bf16.msra.mxu0 %v565
    %1469 = vmatprep.subr.bf16.mxu0 %v570
    %1470 = vmatpush1.bf16.msra.mxu0 %v569
    %1471 = vmatprep.subr.bf16.mxu0 %v574
    %1472 = vmatpush1.bf16.msra.mxu0 %v573
    %1473 = vmatprep.subr.bf16.mxu0 %v578
    %1474 = vmatpush1.bf16.msra.mxu0 %v577
    %1475 = vmatprep.subr.bf16.mxu0 %v582
    %1476 = vmatpush1.bf16.msra.mxu0 %v581
    %1477 = vmatprep.subr.bf16.mxu0 0
    %1478 = vmatpush1.bf16.msra.mxu0 0
    %1479 = vmatprep.subr.bf16.mxu0 0
    %1480 = vmatpush1.bf16.msra.mxu0 0
    %1481 = vmatprep.subr.bf16.mxu0 0
    %1482 = vmatpush1.bf16.msra.mxu0 0
    %1483 = vmatprep.subr.bf16.mxu0 0
    %1484 = vmatpush1.bf16.msra.mxu0 0
    %1485 = vmatprep.subr.bf16.mxu0 0
    %1486 = vmatpush1.bf16.msra.mxu0 0
    %1487 = vmatprep.subr.bf16.mxu0 0
    %1488 = vmatpush1.bf16.msra.mxu0 0
    %1489 = vmatprep.subr.bf16.mxu0 0
    %1490 = vmatpush1.bf16.msra.mxu0 0
    %1491 = vmatprep.subr.bf16.mxu0 0
    %1492 = vmatpush1.bf16.msra.mxu0 0
    %1493 = vmatprep.mubr.bf16.mxu0 0
    %1494 = vmatmul.mubr.bf16.gmra.mrb[0].mxu0 %v1418
    %v1495 = vpop.f32.mrb[0].mxu0
    %v1496 = vadd.f32 0.0, %v1495
    %v1497 = vpop.f32.mrb[0].mxu0
    %v1498 = vadd.f32 0.0, %v1497
    %v1499 = vpop.f32.mrb[0].mxu0
    %v1500 = vpop.f32.mrb[0].mxu0
    %1501 = vdwg.mxu0
    %1502 = vmatprep.subr.bf16.mxu0 %v794
    %1503 = vmatpush1.bf16.msra.mxu0 %v793
    %1504 = vmatprep.subr.bf16.mxu0 %v798
    %1505 = vmatpush1.bf16.msra.mxu0 %v797
    %1506 = vmatprep.subr.bf16.mxu0 %v802
    %1507 = vmatpush1.bf16.msra.mxu0 %v801
    %1508 = vmatprep.subr.bf16.mxu0 %v806
    %1509 = vmatpush1.bf16.msra.mxu0 %v805
    %1510 = vmatprep.subr.bf16.mxu0 %v810
    %1511 = vmatpush1.bf16.msra.mxu0 %v809
    %1512 = vmatprep.subr.bf16.mxu0 %v814
    %1513 = vmatpush1.bf16.msra.mxu0 %v813
    %1514 = vmatprep.subr.bf16.mxu0 %v818
    %1515 = vmatpush1.bf16.msra.mxu0 %v817
    %1516 = vmatprep.subr.bf16.mxu0 %v822
    %1517 = vmatpush1.bf16.msra.mxu0 %v821
    %1518 = vmatprep.subr.bf16.mxu0 0
    %1519 = vmatpush1.bf16.msra.mxu0 0
    %1520 = vmatprep.subr.bf16.mxu0 0
    %1521 = vmatpush1.bf16.msra.mxu0 0
    %1522 = vmatprep.subr.bf16.mxu0 0
    %1523 = vmatpush1.bf16.msra.mxu0 0
    %1524 = vmatprep.subr.bf16.mxu0 0
    %1525 = vmatpush1.bf16.msra.mxu0 0
    %1526 = vmatprep.subr.bf16.mxu0 0
    %1527 = vmatpush1.bf16.msra.mxu0 0
    %1528 = vmatprep.subr.bf16.mxu0 0
    %1529 = vmatpush1.bf16.msra.mxu0 0
    %1530 = vmatprep.subr.bf16.mxu0 0
    %1531 = vmatpush1.bf16.msra.mxu0 0
    %1532 = vmatprep.subr.bf16.mxu0 0
    %1533 = vmatpush1.bf16.msra.mxu0 0
    %1534 = vmatprep.mubr.bf16.mxu0 0
    %1535 = vmatmul.mubr.bf16.gmra.mrb[0].mxu0 %v1418
    %v1536 = vpop.f32.mrb[0].mxu0
    %v1537 = vadd.f32 %v1455, %v1536
    %v1538 = vpop.f32.mrb[0].mxu0
    %v1539 = vadd.f32 %v1457, %v1538
    %v1540 = vpop.f32.mrb[0].mxu0
    %v1541 = vpop.f32.mrb[0].mxu0
    %1542 = vdwg.mxu0
    %1543 = vmatprep.subr.bf16.mxu0 %v796
    %1544 = vmatpush1.bf16.msra.mxu0 %v795
    %1545 = vmatprep.subr.bf16.mxu0 %v800
    %1546 = vmatpush1.bf16.msra.mxu0 %v799
    %1547 = vmatprep.subr.bf16.mxu0 %v804
    %1548 = vmatpush1.bf16.msra.mxu0 %v803
    %1549 = vmatprep.subr.bf16.mxu0 %v808
    %1550 = vmatpush1.bf16.msra.mxu0 %v807
    %1551 = vmatprep.subr.bf16.mxu0 %v812
    %1552 = vmatpush1.bf16.msra.mxu0 %v811
    %1553 = vmatprep.subr.bf16.mxu0 %v816
    %1554 = vmatpush1.bf16.msra.mxu0 %v815
    %1555 = vmatprep.subr.bf16.mxu0 %v820
    %1556 = vmatpush1.bf16.msra.mxu0 %v819
    %1557 = vmatprep.subr.bf16.mxu0 %v824
    %1558 = vmatpush1.bf16.msra.mxu0 %v823
    %1559 = vmatprep.subr.bf16.mxu0 0
    %1560 = vmatpush1.bf16.msra.mxu0 0
    %1561 = vmatprep.subr.bf16.mxu0 0
    %1562 = vmatpush1.bf16.msra.mxu0 0
    %1563 = vmatprep.subr.bf16.mxu0 0
    %1564 = vmatpush1.bf16.msra.mxu0 0
    %1565 = vmatprep.subr.bf16.mxu0 0
    %1566 = vmatpush1.bf16.msra.mxu0 0
    %1567 = vmatprep.subr.bf16.mxu0 0
    %1568 = vmatpush1.bf16.msra.mxu0 0
    %1569 = vmatprep.subr.bf16.mxu0 0
    %1570 = vmatpush1.bf16.msra.mxu0 0
    %1571 = vmatprep.subr.bf16.mxu0 0
    %1572 = vmatpush1.bf16.msra.mxu0 0
    %1573 = vmatprep.subr.bf16.mxu0 0
    %1574 = vmatpush1.bf16.msra.mxu0 0
    %1575 = vmatprep.mubr.bf16.mxu0 0
    %1576 = vmatmul.mubr.bf16.gmra.mrb[0].mxu0 %v1418
    %v1577 = vpop.f32.mrb[0].mxu0
    %v1578 = vadd.f32 %v1496, %v1577
    %v1579 = vpop.f32.mrb[0].mxu0
    %v1580 = vadd.f32 %v1498, %v1579
    %v1581 = vpop.f32.mrb[0].mxu0
    %v1582 = vpop.f32.mrb[0].mxu0
    %1583 = vdwg.mxu0
    %v1584 = vadd.f32 %v346, %v1537
    %v1585 = vadd.f32 %v347, %v1539
    %v1586 = vadd.f32 %v348, %v1578
    %v1587 = vadd.f32 %v349, %v1580
    %v1588 = vxor.u32 %v1584, 2147483648
    %v1589 = vxor.u32 %v1585, 2147483648
    %v1590 = vxor.u32 %v1586, 2147483648
    %v1591 = vmul.f32 %v1588, 1.442695
    %v1592 = vpow.pop %v1591
    %v1593 = vmul.f32 %v1589, 1.442695
    %v1594 = vpow.pop %v1593
    %v1595 = vmul.f32 %v1590, 1.442695
    %v1596 = vpow.pop %v1595
    %v1597 = vadd.f32 %v1592, 1.0
    %v1598 = vadd.f32 %v1594, 1.0
    %v1599 = vadd.f32 %v1596, 1.0
    %v1600 = vrcp.pop %v1597
    %v1601 = vmul.f32 1.0, %v1600
    %v1602 = vrcp.pop %v1598
    %v1603 = vmul.f32 1.0, %v1602
    %v1604 = vrcp.pop %v1599
    %v1605 = vmul.f32 1.0, %v1604
    %v1606 = vtanh.pop %v1587
    %v1608 = vrot.slane %v1409, 6
    %v1610 = vmul.f32 %v1603, %v1608
    %v1611 = vmul.f32 %v1601, %v1606
    %v1612 = vadd.f32 %v1610, %v1611
    %v1613 = vtanh.pop %v1612
    %v1614 = vmul.f32 %v1605, %v1613
    %v1615 = vmax.f32 %v1415, %v1614
    %v1616 = vpack.c.bf16 %v1614, %v1614
    %1617 = vmatprep.subr.bf16.mxu0 %v552
    %1618 = vmatpush1.bf16.msra.mxu0 %v551
    %1619 = vmatprep.subr.bf16.mxu0 %v556
    %1620 = vmatpush1.bf16.msra.mxu0 %v555
    %1621 = vmatprep.subr.bf16.mxu0 %v560
    %1622 = vmatpush1.bf16.msra.mxu0 %v559
    %1623 = vmatprep.subr.bf16.mxu0 %v564
    %1624 = vmatpush1.bf16.msra.mxu0 %v563
    %1625 = vmatprep.subr.bf16.mxu0 %v568
    %1626 = vmatpush1.bf16.msra.mxu0 %v567
    %1627 = vmatprep.subr.bf16.mxu0 %v572
    %1628 = vmatpush1.bf16.msra.mxu0 %v571
    %1629 = vmatprep.subr.bf16.mxu0 %v576
    %1630 = vmatpush1.bf16.msra.mxu0 %v575
    %1631 = vmatprep.subr.bf16.mxu0 %v580
    %1632 = vmatpush1.bf16.msra.mxu0 %v579
    %1633 = vmatprep.subr.bf16.mxu0 0
    %1634 = vmatpush1.bf16.msra.mxu0 0
    %1635 = vmatprep.subr.bf16.mxu0 0
    %1636 = vmatpush1.bf16.msra.mxu0 0
    %1637 = vmatprep.subr.bf16.mxu0 0
    %1638 = vmatpush1.bf16.msra.mxu0 0
    %1639 = vmatprep.subr.bf16.mxu0 0
    %1640 = vmatpush1.bf16.msra.mxu0 0
    %1641 = vmatprep.subr.bf16.mxu0 0
    %1642 = vmatpush1.bf16.msra.mxu0 0
    %1643 = vmatprep.subr.bf16.mxu0 0
    %1644 = vmatpush1.bf16.msra.mxu0 0
    %1645 = vmatprep.subr.bf16.mxu0 0
    %1646 = vmatpush1.bf16.msra.mxu0 0
    %1647 = vmatprep.subr.bf16.mxu0 0
    %1648 = vmatpush1.bf16.msra.mxu0 0
    %1649 = vmatprep.mubr.bf16.mxu0 0
    %1650 = vmatmul.mubr.bf16.gmra.mrb[0].mxu0 %v1616
    %v1651 = vpop.f32.mrb[0].mxu0
    %v1652 = vadd.f32 0.0, %v1651
    %v1653 = vpop.f32.mrb[0].mxu0
    %v1654 = vadd.f32 0.0, %v1653
    %v1655 = vpop.f32.mrb[0].mxu0
    %v1656 = vpop.f32.mrb[0].mxu0
    %1657 = vdwg.mxu0
    %1658 = vmatprep.subr.bf16.mxu0 %v554
    %1659 = vmatpush1.bf16.msra.mxu0 %v553
    %1660 = vmatprep.subr.bf16.mxu0 %v558
    %1661 = vmatpush1.bf16.msra.mxu0 %v557
    %1662 = vmatprep.subr.bf16.mxu0 %v562
    %1663 = vmatpush1.bf16.msra.mxu0 %v561
    %1664 = vmatprep.subr.bf16.mxu0 %v566
    %1665 = vmatpush1.bf16.msra.mxu0 %v565
    %1666 = vmatprep.subr.bf16.mxu0 %v570
    %1667 = vmatpush1.bf16.msra.mxu0 %v569
    %1668 = vmatprep.subr.bf16.mxu0 %v574
    %1669 = vmatpush1.bf16.msra.mxu0 %v573
    %1670 = vmatprep.subr.bf16.mxu0 %v578
    %1671 = vmatpush1.bf16.msra.mxu0 %v577
    %1672 = vmatprep.subr.bf16.mxu0 %v582
    %1673 = vmatpush1.bf16.msra.mxu0 %v581
    %1674 = vmatprep.subr.bf16.mxu0 0
    %1675 = vmatpush1.bf16.msra.mxu0 0
    %1676 = vmatprep.subr.bf16.mxu0 0
    %1677 = vmatpush1.bf16.msra.mxu0 0
    %1678 = vmatprep.subr.bf16.mxu0 0
    %1679 = vmatpush1.bf16.msra.mxu0 0
    %1680 = vmatprep.subr.bf16.mxu0 0
    %1681 = vmatpush1.bf16.msra.mxu0 0
    %1682 = vmatprep.subr.bf16.mxu0 0
    %1683 = vmatpush1.bf16.msra.mxu0 0
    %1684 = vmatprep.subr.bf16.mxu0 0
    %1685 = vmatpush1.bf16.msra.mxu0 0
    %1686 = vmatprep.subr.bf16.mxu0 0
    %1687 = vmatpush1.bf16.msra.mxu0 0
    %1688 = vmatprep.subr.bf16.mxu0 0
    %1689 = vmatpush1.bf16.msra.mxu0 0
    %1690 = vmatprep.mubr.bf16.mxu0 0
    %1691 = vmatmul.mubr.bf16.gmra.mrb[0].mxu0 %v1616
    %v1692 = vpop.f32.mrb[0].mxu0
    %v1693 = vadd.f32 0.0, %v1692
    %v1694 = vpop.f32.mrb[0].mxu0
    %v1695 = vadd.f32 0.0, %v1694
    %v1696 = vpop.f32.mrb[0].mxu0
    %v1697 = vpop.f32.mrb[0].mxu0
    %1698 = vdwg.mxu0
    %1699 = vmatprep.subr.bf16.mxu0 %v794
    %1700 = vmatpush1.bf16.msra.mxu0 %v793
    %1701 = vmatprep.subr.bf16.mxu0 %v798
    %1702 = vmatpush1.bf16.msra.mxu0 %v797
    %1703 = vmatprep.subr.bf16.mxu0 %v802
    %1704 = vmatpush1.bf16.msra.mxu0 %v801
    %1705 = vmatprep.subr.bf16.mxu0 %v806
    %1706 = vmatpush1.bf16.msra.mxu0 %v805
    %1707 = vmatprep.subr.bf16.mxu0 %v810
    %1708 = vmatpush1.bf16.msra.mxu0 %v809
    %1709 = vmatprep.subr.bf16.mxu0 %v814
    %1710 = vmatpush1.bf16.msra.mxu0 %v813
    %1711 = vmatprep.subr.bf16.mxu0 %v818
    %1712 = vmatpush1.bf16.msra.mxu0 %v817
    %1713 = vmatprep.subr.bf16.mxu0 %v822
    %1714 = vmatpush1.bf16.msra.mxu0 %v821
    %1715 = vmatprep.subr.bf16.mxu0 0
    %1716 = vmatpush1.bf16.msra.mxu0 0
    %1717 = vmatprep.subr.bf16.mxu0 0
    %1718 = vmatpush1.bf16.msra.mxu0 0
    %1719 = vmatprep.subr.bf16.mxu0 0
    %1720 = vmatpush1.bf16.msra.mxu0 0
    %1721 = vmatprep.subr.bf16.mxu0 0
    %1722 = vmatpush1.bf16.msra.mxu0 0
    %1723 = vmatprep.subr.bf16.mxu0 0
    %1724 = vmatpush1.bf16.msra.mxu0 0
    %1725 = vmatprep.subr.bf16.mxu0 0
    %1726 = vmatpush1.bf16.msra.mxu0 0
    %1727 = vmatprep.subr.bf16.mxu0 0
    %1728 = vmatpush1.bf16.msra.mxu0 0
    %1729 = vmatprep.subr.bf16.mxu0 0
    %1730 = vmatpush1.bf16.msra.mxu0 0
    %1731 = vmatprep.mubr.bf16.mxu0 0
    %1732 = vmatmul.mubr.bf16.gmra.mrb[0].mxu0 %v1616
    %v1733 = vpop.f32.mrb[0].mxu0
    %v1734 = vadd.f32 %v1652, %v1733
    %v1735 = vpop.f32.mrb[0].mxu0
    %v1736 = vadd.f32 %v1654, %v1735
    %v1737 = vpop.f32.mrb[0].mxu0
    %v1738 = vpop.f32.mrb[0].mxu0
    %1739 = vdwg.mxu0
    %1740 = vmatprep.subr.bf16.mxu0 %v796
    %1741 = vmatpush1.bf16.msra.mxu0 %v795
    %1742 = vmatprep.subr.bf16.mxu0 %v800
    %1743 = vmatpush1.bf16.msra.mxu0 %v799
    %1744 = vmatprep.subr.bf16.mxu0 %v804
    %1745 = vmatpush1.bf16.msra.mxu0 %v803
    %1746 = vmatprep.subr.bf16.mxu0 %v808
    %1747 = vmatpush1.bf16.msra.mxu0 %v807
    %1748 = vmatprep.subr.bf16.mxu0 %v812
    %1749 = vmatpush1.bf16.msra.mxu0 %v811
    %1750 = vmatprep.subr.bf16.mxu0 %v816
    %1751 = vmatpush1.bf16.msra.mxu0 %v815
    %1752 = vmatprep.subr.bf16.mxu0 %v820
    %1753 = vmatpush1.bf16.msra.mxu0 %v819
    %1754 = vmatprep.subr.bf16.mxu0 %v824
    %1755 = vmatpush1.bf16.msra.mxu0 %v823
    %1756 = vmatprep.subr.bf16.mxu0 0
    %1757 = vmatpush1.bf16.msra.mxu0 0
    %1758 = vmatprep.subr.bf16.mxu0 0
    %1759 = vmatpush1.bf16.msra.mxu0 0
    %1760 = vmatprep.subr.bf16.mxu0 0
    %1761 = vmatpush1.bf16.msra.mxu0 0
    %1762 = vmatprep.subr.bf16.mxu0 0
    %1763 = vmatpush1.bf16.msra.mxu0 0
    %1764 = vmatprep.subr.bf16.mxu0 0
    %1765 = vmatpush1.bf16.msra.mxu0 0
    %1766 = vmatprep.subr.bf16.mxu0 0
    %1767 = vmatpush1.bf16.msra.mxu0 0
    %1768 = vmatprep.subr.bf16.mxu0 0
    %1769 = vmatpush1.bf16.msra.mxu0 0
    %1770 = vmatprep.subr.bf16.mxu0 0
    %1771 = vmatpush1.bf16.msra.mxu0 0
    %1772 = vmatprep.mubr.bf16.mxu0 0
    %1773 = vmatmul.mubr.bf16.gmra.mrb[0].mxu0 %v1616
    %v1774 = vpop.f32.mrb[0].mxu0
    %v1775 = vadd.f32 %v1693, %v1774
    %v1776 = vpop.f32.mrb[0].mxu0
    %v1777 = vadd.f32 %v1695, %v1776
    %v1778 = vpop.f32.mrb[0].mxu0
    %v1779 = vpop.f32.mrb[0].mxu0
    %1780 = vdwg.mxu0
    %v1785 = vrot.slane %v1734, 6
    %v1786 = vrot.slane %v1736, 6
    %v1787 = vrot.slane %v1775, 6
    %v1788 = vrot.slane %v1777, 6
    %v1793 = vadd.f32 %v362, %v1785
    %v1794 = vadd.f32 %v363, %v1786
    %v1795 = vadd.f32 %v364, %v1787
    %v1796 = vadd.f32 %v365, %v1788
    %v1797 = vxor.u32 %v1793, 2147483648
    %v1798 = vxor.u32 %v1794, 2147483648
    %v1799 = vxor.u32 %v1795, 2147483648
    %v1800 = vmul.f32 %v1797, 1.442695
    %v1801 = vpow.pop %v1800
    %v1802 = vmul.f32 %v1798, 1.442695
    %v1803 = vpow.pop %v1802
    %v1804 = vmul.f32 %v1799, 1.442695
    %v1805 = vpow.pop %v1804
    %v1806 = vadd.f32 %v1801, 1.0
    %v1807 = vadd.f32 %v1803, 1.0
    %v1808 = vadd.f32 %v1805, 1.0
    %v1809 = vrcp.pop %v1806
    %v1810 = vmul.f32 1.0, %v1809
    %v1811 = vrcp.pop %v1807
    %v1812 = vmul.f32 1.0, %v1811
    %v1813 = vrcp.pop %v1808
    %v1814 = vmul.f32 1.0, %v1813
    %v1815 = vtanh.pop %v1796
    %v1817 = vrot.slane %v1612, 6
    %v1819 = vmul.f32 %v1812, %v1817
    %v1820 = vmul.f32 %v1810, %v1815
    %v1821 = vadd.f32 %v1819, %v1820
    %v1822 = vtanh.pop %v1821
    %v1823 = vmul.f32 %v1814, %v1822
    %v1825 = vrot.slane %v1823, 2
    %v1827 = vmax.f32 %v1615, %v1825
    %v1828 = vpack.c.bf16 %v1823, %v1823
    %v1830 = vrot.slane %v1828, 1
    %1832 = vmatprep.subr.bf16.mxu0 %v552
    %1833 = vmatpush1.bf16.msra.mxu0 %v551
    %1834 = vmatprep.subr.bf16.mxu0 %v556
    %1835 = vmatpush1.bf16.msra.mxu0 %v555
    %1836 = vmatprep.subr.bf16.mxu0 %v560
    %1837 = vmatpush1.bf16.msra.mxu0 %v559
    %1838 = vmatprep.subr.bf16.mxu0 %v564
    %1839 = vmatpush1.bf16.msra.mxu0 %v563
    %1840 = vmatprep.subr.bf16.mxu0 %v568
    %1841 = vmatpush1.bf16.msra.mxu0 %v567
    %1842 = vmatprep.subr.bf16.mxu0 %v572
    %1843 = vmatpush1.bf16.msra.mxu0 %v571
    %1844 = vmatprep.subr.bf16.mxu0 %v576
    %1845 = vmatpush1.bf16.msra.mxu0 %v575
    %1846 = vmatprep.subr.bf16.mxu0 %v580
    %1847 = vmatpush1.bf16.msra.mxu0 %v579
    %1848 = vmatprep.subr.bf16.mxu0 0
    %1849 = vmatpush1.bf16.msra.mxu0 0
    %1850 = vmatprep.subr.bf16.mxu0 0
    %1851 = vmatpush1.bf16.msra.mxu0 0
    %1852 = vmatprep.subr.bf16.mxu0 0
    %1853 = vmatpush1.bf16.msra.mxu0 0
    %1854 = vmatprep.subr.bf16.mxu0 0
    %1855 = vmatpush1.bf16.msra.mxu0 0
    %1856 = vmatprep.subr.bf16.mxu0 0
    %1857 = vmatpush1.bf16.msra.mxu0 0
    %1858 = vmatprep.subr.bf16.mxu0 0
    %1859 = vmatpush1.bf16.msra.mxu0 0
    %1860 = vmatprep.subr.bf16.mxu0 0
    %1861 = vmatpush1.bf16.msra.mxu0 0
    %1862 = vmatprep.subr.bf16.mxu0 0
    %1863 = vmatpush1.bf16.msra.mxu0 0
    %1864 = vmatprep.mubr.bf16.mxu0 0
    %1865 = vmatmul.mubr.bf16.gmra.mrb[0].mxu0 %v1830
    %v1866 = vpop.f32.mrb[0].mxu0
    %v1867 = vadd.f32 0.0, %v1866
    %v1868 = vpop.f32.mrb[0].mxu0
    %v1869 = vadd.f32 0.0, %v1868
    %v1870 = vpop.f32.mrb[0].mxu0
    %v1871 = vpop.f32.mrb[0].mxu0
    %1872 = vdwg.mxu0
    %1873 = vmatprep.subr.bf16.mxu0 %v554
    %1874 = vmatpush1.bf16.msra.mxu0 %v553
    %1875 = vmatprep.subr.bf16.mxu0 %v558
    %1876 = vmatpush1.bf16.msra.mxu0 %v557
    %1877 = vmatprep.subr.bf16.mxu0 %v562
    %1878 = vmatpush1.bf16.msra.mxu0 %v561
    %1879 = vmatprep.subr.bf16.mxu0 %v566
    %1880 = vmatpush1.bf16.msra.mxu0 %v565
    %1881 = vmatprep.subr.bf16.mxu0 %v570
    %1882 = vmatpush1.bf16.msra.mxu0 %v569
    %1883 = vmatprep.subr.bf16.mxu0 %v574
    %1884 = vmatpush1.bf16.msra.mxu0 %v573
    %1885 = vmatprep.subr.bf16.mxu0 %v578
    %1886 = vmatpush1.bf16.msra.mxu0 %v577
    %1887 = vmatprep.subr.bf16.mxu0 %v582
    %1888 = vmatpush1.bf16.msra.mxu0 %v581
    %1889 = vmatprep.subr.bf16.mxu0 0
    %1890 = vmatpush1.bf16.msra.mxu0 0
    %1891 = vmatprep.subr.bf16.mxu0 0
    %1892 = vmatpush1.bf16.msra.mxu0 0
    %1893 = vmatprep.subr.bf16.mxu0 0
    %1894 = vmatpush1.bf16.msra.mxu0 0
    %1895 = vmatprep.subr.bf16.mxu0 0
    %1896 = vmatpush1.bf16.msra.mxu0 0
    %1897 = vmatprep.subr.bf16.mxu0 0
    %1898 = vmatpush1.bf16.msra.mxu0 0
    %1899 = vmatprep.subr.bf16.mxu0 0
    %1900 = vmatpush1.bf16.msra.mxu0 0
    %1901 = vmatprep.subr.bf16.mxu0 0
    %1902 = vmatpush1.bf16.msra.mxu0 0
    %1903 = vmatprep.subr.bf16.mxu0 0
    %1904 = vmatpush1.bf16.msra.mxu0 0
    %1905 = vmatprep.mubr.bf16.mxu0 0
    %1906 = vmatmul.mubr.bf16.gmra.mrb[0].mxu0 %v1830
    %v1907 = vpop.f32.mrb[0].mxu0
    %v1908 = vadd.f32 0.0, %v1907
    %v1909 = vpop.f32.mrb[0].mxu0
    %v1910 = vadd.f32 0.0, %v1909
    %v1911 = vpop.f32.mrb[0].mxu0
    %v1912 = vpop.f32.mrb[0].mxu0
    %1913 = vdwg.mxu0
    %1914 = vmatprep.subr.bf16.mxu0 %v794
    %1915 = vmatpush1.bf16.msra.mxu0 %v793
    %1916 = vmatprep.subr.bf16.mxu0 %v798
    %1917 = vmatpush1.bf16.msra.mxu0 %v797
    %1918 = vmatprep.subr.bf16.mxu0 %v802
    %1919 = vmatpush1.bf16.msra.mxu0 %v801
    %1920 = vmatprep.subr.bf16.mxu0 %v806
    %1921 = vmatpush1.bf16.msra.mxu0 %v805
    %1922 = vmatprep.subr.bf16.mxu0 %v810
    %1923 = vmatpush1.bf16.msra.mxu0 %v809
    %1924 = vmatprep.subr.bf16.mxu0 %v814
    %1925 = vmatpush1.bf16.msra.mxu0 %v813
    %1926 = vmatprep.subr.bf16.mxu0 %v818
    %1927 = vmatpush1.bf16.msra.mxu0 %v817
    %1928 = vmatprep.subr.bf16.mxu0 %v822
    %1929 = vmatpush1.bf16.msra.mxu0 %v821
    %1930 = vmatprep.subr.bf16.mxu0 0
    %1931 = vmatpush1.bf16.msra.mxu0 0
    %1932 = vmatprep.subr.bf16.mxu0 0
    %1933 = vmatpush1.bf16.msra.mxu0 0
    %1934 = vmatprep.subr.bf16.mxu0 0
    %1935 = vmatpush1.bf16.msra.mxu0 0
    %1936 = vmatprep.subr.bf16.mxu0 0
    %1937 = vmatpush1.bf16.msra.mxu0 0
    %1938 = vmatprep.subr.bf16.mxu0 0
    %1939 = vmatpush1.bf16.msra.mxu0 0
    %1940 = vmatprep.subr.bf16.mxu0 0
    %1941 = vmatpush1.bf16.msra.mxu0 0
    %1942 = vmatprep.subr.bf16.mxu0 0
    %1943 = vmatpush1.bf16.msra.mxu0 0
    %1944 = vmatprep.subr.bf16.mxu0 0
    %1945 = vmatpush1.bf16.msra.mxu0 0
    %1946 = vmatprep.mubr.bf16.mxu0 0
    %1947 = vmatmul.mubr.bf16.gmra.mrb[0].mxu0 %v1830
    %v1948 = vpop.f32.mrb[0].mxu0
    %v1949 = vadd.f32 %v1867, %v1948
    %v1950 = vpop.f32.mrb[0].mxu0
    %v1951 = vadd.f32 %v1869, %v1950
    %v1952 = vpop.f32.mrb[0].mxu0
    %v1953 = vpop.f32.mrb[0].mxu0
    %1954 = vdwg.mxu0
    %1955 = vmatprep.subr.bf16.mxu0 %v796
    %1956 = vmatpush1.bf16.msra.mxu0 %v795
    %1957 = vmatprep.subr.bf16.mxu0 %v800
    %1958 = vmatpush1.bf16.msra.mxu0 %v799
    %1959 = vmatprep.subr.bf16.mxu0 %v804
    %1960 = vmatpush1.bf16.msra.mxu0 %v803
    %1961 = vmatprep.subr.bf16.mxu0 %v808
    %1962 = vmatpush1.bf16.msra.mxu0 %v807
    %1963 = vmatprep.subr.bf16.mxu0 %v812
    %1964 = vmatpush1.bf16.msra.mxu0 %v811
    %1965 = vmatprep.subr.bf16.mxu0 %v816
    %1966 = vmatpush1.bf16.msra.mxu0 %v815
    %1967 = vmatprep.subr.bf16.mxu0 %v820
    %1968 = vmatpush1.bf16.msra.mxu0 %v819
    %1969 = vmatprep.subr.bf16.mxu0 %v824
    %1970 = vmatpush1.bf16.msra.mxu0 %v823
    %1971 = vmatprep.subr.bf16.mxu0 0
    %1972 = vmatpush1.bf16.msra.mxu0 0
    %1973 = vmatprep.subr.bf16.mxu0 0
    %1974 = vmatpush1.bf16.msra.mxu0 0
    %1975 = vmatprep.subr.bf16.mxu0 0
    %1976 = vmatpush1.bf16.msra.mxu0 0
    %1977 = vmatprep.subr.bf16.mxu0 0
    %1978 = vmatpush1.bf16.msra.mxu0 0
    %1979 = vmatprep.subr.bf16.mxu0 0
    %1980 = vmatpush1.bf16.msra.mxu0 0
    %1981 = vmatprep.subr.bf16.mxu0 0
    %1982 = vmatpush1.bf16.msra.mxu0 0
    %1983 = vmatprep.subr.bf16.mxu0 0
    %1984 = vmatpush1.bf16.msra.mxu0 0
    %1985 = vmatprep.subr.bf16.mxu0 0
    %1986 = vmatpush1.bf16.msra.mxu0 0
    %1987 = vmatprep.mubr.bf16.mxu0 0
    %1988 = vmatmul.mubr.bf16.gmra.mrb[0].mxu0 %v1830
    %v1989 = vpop.f32.mrb[0].mxu0
    %v1990 = vadd.f32 %v1908, %v1989
    %v1991 = vpop.f32.mrb[0].mxu0
    %v1992 = vadd.f32 %v1910, %v1991
    %v1993 = vpop.f32.mrb[0].mxu0
    %v1994 = vpop.f32.mrb[0].mxu0
    %1995 = vdwg.mxu0
    %v2000 = vrot.slane %v1949, 4
    %v2001 = vrot.slane %v1951, 4
    %v2002 = vrot.slane %v1990, 4
    %v2003 = vrot.slane %v1992, 4
    %v2008 = vadd.f32 %v346, %v2000
    %v2009 = vadd.f32 %v347, %v2001
    %v2010 = vadd.f32 %v348, %v2002
    %v2011 = vadd.f32 %v349, %v2003
    %v2012 = vxor.u32 %v2008, 2147483648
    %v2013 = vxor.u32 %v2009, 2147483648
    %v2014 = vxor.u32 %v2010, 2147483648
    %v2015 = vmul.f32 %v2012, 1.442695
    %v2016 = vpow.pop %v2015
    %v2017 = vmul.f32 %v2013, 1.442695
    %v2018 = vpow.pop %v2017
    %v2019 = vmul.f32 %v2014, 1.442695
    %v2020 = vpow.pop %v2019
    %v2021 = vadd.f32 %v2016, 1.0
    %v2022 = vadd.f32 %v2018, 1.0
    %v2023 = vadd.f32 %v2020, 1.0
    %v2024 = vrcp.pop %v2021
    %v2025 = vmul.f32 1.0, %v2024
    %v2026 = vrcp.pop %v2022
    %v2027 = vmul.f32 1.0, %v2026
    %v2028 = vrcp.pop %v2023
    %v2029 = vmul.f32 1.0, %v2028
    %v2030 = vtanh.pop %v2011
    %v2032 = vrot.slane %v1821, 6
    %v2034 = vmul.f32 %v2027, %v2032
    %v2035 = vmul.f32 %v2025, %v2030
    %v2036 = vadd.f32 %v2034, %v2035
    %v2037 = vtanh.pop %v2036
    %v2038 = vmul.f32 %v2029, %v2037
    %v2040 = vrot.slane %v2038, 4
    %v2042 = vmax.f32 %v1827, %v2040
    %v2043 = vpack.c.bf16 %v2038, %v2038
    %v2045 = vrot.slane %v2043, 2
    %2047 = vmatprep.subr.bf16.mxu0 %v552
    %2048 = vmatpush1.bf16.msra.mxu0 %v551
    %2049 = vmatprep.subr.bf16.mxu0 %v556
    %2050 = vmatpush1.bf16.msra.mxu0 %v555
    %2051 = vmatprep.subr.bf16.mxu0 %v560
    %2052 = vmatpush1.bf16.msra.mxu0 %v559
    %2053 = vmatprep.subr.bf16.mxu0 %v564
    %2054 = vmatpush1.bf16.msra.mxu0 %v563
    %2055 = vmatprep.subr.bf16.mxu0 %v568
    %2056 = vmatpush1.bf16.msra.mxu0 %v567
    %2057 = vmatprep.subr.bf16.mxu0 %v572
    %2058 = vmatpush1.bf16.msra.mxu0 %v571
    %2059 = vmatprep.subr.bf16.mxu0 %v576
    %2060 = vmatpush1.bf16.msra.mxu0 %v575
    %2061 = vmatprep.subr.bf16.mxu0 %v580
    %2062 = vmatpush1.bf16.msra.mxu0 %v579
    %2063 = vmatprep.subr.bf16.mxu0 0
    %2064 = vmatpush1.bf16.msra.mxu0 0
    %2065 = vmatprep.subr.bf16.mxu0 0
    %2066 = vmatpush1.bf16.msra.mxu0 0
    %2067 = vmatprep.subr.bf16.mxu0 0
    %2068 = vmatpush1.bf16.msra.mxu0 0
    %2069 = vmatprep.subr.bf16.mxu0 0
    %2070 = vmatpush1.bf16.msra.mxu0 0
    %2071 = vmatprep.subr.bf16.mxu0 0
    %2072 = vmatpush1.bf16.msra.mxu0 0
    %2073 = vmatprep.subr.bf16.mxu0 0
    %2074 = vmatpush1.bf16.msra.mxu0 0
    %2075 = vmatprep.subr.bf16.mxu0 0
    %2076 = vmatpush1.bf16.msra.mxu0 0
    %2077 = vmatprep.subr.bf16.mxu0 0
    %2078 = vmatpush1.bf16.msra.mxu0 0
    %2079 = vmatprep.mubr.bf16.mxu0 0
    %2080 = vmatmul.mubr.bf16.gmra.mrb[0].mxu0 %v2045
    %v2081 = vpop.f32.mrb[0].mxu0
    %v2082 = vadd.f32 0.0, %v2081
    %v2083 = vpop.f32.mrb[0].mxu0
    %v2084 = vadd.f32 0.0, %v2083
    %v2085 = vpop.f32.mrb[0].mxu0
    %v2086 = vpop.f32.mrb[0].mxu0
    %2087 = vdwg.mxu0
    %2088 = vmatprep.subr.bf16.mxu0 %v554
    %2089 = vmatpush1.bf16.msra.mxu0 %v553
    %2090 = vmatprep.subr.bf16.mxu0 %v558
    %2091 = vmatpush1.bf16.msra.mxu0 %v557
    %2092 = vmatprep.subr.bf16.mxu0 %v562
    %2093 = vmatpush1.bf16.msra.mxu0 %v561
    %2094 = vmatprep.subr.bf16.mxu0 %v566
    %2095 = vmatpush1.bf16.msra.mxu0 %v565
    %2096 = vmatprep.subr.bf16.mxu0 %v570
    %2097 = vmatpush1.bf16.msra.mxu0 %v569
    %2098 = vmatprep.subr.bf16.mxu0 %v574
    %2099 = vmatpush1.bf16.msra.mxu0 %v573
    %2100 = vmatprep.subr.bf16.mxu0 %v578
    %2101 = vmatpush1.bf16.msra.mxu0 %v577
    %2102 = vmatprep.subr.bf16.mxu0 %v582
    %2103 = vmatpush1.bf16.msra.mxu0 %v581
    %2104 = vmatprep.subr.bf16.mxu0 0
    %2105 = vmatpush1.bf16.msra.mxu0 0
    %2106 = vmatprep.subr.bf16.mxu0 0
    %2107 = vmatpush1.bf16.msra.mxu0 0
    %2108 = vmatprep.subr.bf16.mxu0 0
    %2109 = vmatpush1.bf16.msra.mxu0 0
    %2110 = vmatprep.subr.bf16.mxu0 0
    %2111 = vmatpush1.bf16.msra.mxu0 0
    %2112 = vmatprep.subr.bf16.mxu0 0
    %2113 = vmatpush1.bf16.msra.mxu0 0
    %2114 = vmatprep.subr.bf16.mxu0 0
    %2115 = vmatpush1.bf16.msra.mxu0 0
    %2116 = vmatprep.subr.bf16.mxu0 0
    %2117 = vmatpush1.bf16.msra.mxu0 0
    %2118 = vmatprep.subr.bf16.mxu0 0
    %2119 = vmatpush1.bf16.msra.mxu0 0
    %2120 = vmatprep.mubr.bf16.mxu0 0
    %2121 = vmatmul.mubr.bf16.gmra.mrb[0].mxu0 %v2045
    %v2122 = vpop.f32.mrb[0].mxu0
    %v2123 = vadd.f32 0.0, %v2122
    %v2124 = vpop.f32.mrb[0].mxu0
    %v2125 = vadd.f32 0.0, %v2124
    %v2126 = vpop.f32.mrb[0].mxu0
    %v2127 = vpop.f32.mrb[0].mxu0
    %2128 = vdwg.mxu0
    %2129 = vmatprep.subr.bf16.mxu0 %v794
    %2130 = vmatpush1.bf16.msra.mxu0 %v793
    %2131 = vmatprep.subr.bf16.mxu0 %v798
    %2132 = vmatpush1.bf16.msra.mxu0 %v797
    %2133 = vmatprep.subr.bf16.mxu0 %v802
    %2134 = vmatpush1.bf16.msra.mxu0 %v801
    %2135 = vmatprep.subr.bf16.mxu0 %v806
    %2136 = vmatpush1.bf16.msra.mxu0 %v805
    %2137 = vmatprep.subr.bf16.mxu0 %v810
    %2138 = vmatpush1.bf16.msra.mxu0 %v809
    %2139 = vmatprep.subr.bf16.mxu0 %v814
    %2140 = vmatpush1.bf16.msra.mxu0 %v813
    %2141 = vmatprep.subr.bf16.mxu0 %v818
    %2142 = vmatpush1.bf16.msra.mxu0 %v817
    %2143 = vmatprep.subr.bf16.mxu0 %v822
    %2144 = vmatpush1.bf16.msra.mxu0 %v821
    %2145 = vmatprep.subr.bf16.mxu0 0
    %2146 = vmatpush1.bf16.msra.mxu0 0
    %2147 = vmatprep.subr.bf16.mxu0 0
    %2148 = vmatpush1.bf16.msra.mxu0 0
    %2149 = vmatprep.subr.bf16.mxu0 0
    %2150 = vmatpush1.bf16.msra.mxu0 0
    %2151 = vmatprep.subr.bf16.mxu0 0
    %2152 = vmatpush1.bf16.msra.mxu0 0
    %2153 = vmatprep.subr.bf16.mxu0 0
    %2154 = vmatpush1.bf16.msra.mxu0 0
    %2155 = vmatprep.subr.bf16.mxu0 0
    %2156 = vmatpush1.bf16.msra.mxu0 0
    %2157 = vmatprep.subr.bf16.mxu0 0
    %2158 = vmatpush1.bf16.msra.mxu0 0
    %2159 = vmatprep.subr.bf16.mxu0 0
    %2160 = vmatpush1.bf16.msra.mxu0 0
    %2161 = vmatprep.mubr.bf16.mxu0 0
    %2162 = vmatmul.mubr.bf16.gmra.mrb[0].mxu0 %v2045
    %v2163 = vpop.f32.mrb[0].mxu0
    %v2164 = vadd.f32 %v2082, %v2163
    %v2165 = vpop.f32.mrb[0].mxu0
    %v2166 = vadd.f32 %v2084, %v2165
    %v2167 = vpop.f32.mrb[0].mxu0
    %v2168 = vpop.f32.mrb[0].mxu0
    %2169 = vdwg.mxu0
    %2170 = vmatprep.subr.bf16.mxu0 %v796
    %2171 = vmatpush1.bf16.msra.mxu0 %v795
    %2172 = vmatprep.subr.bf16.mxu0 %v800
    %2173 = vmatpush1.bf16.msra.mxu0 %v799
    %2174 = vmatprep.subr.bf16.mxu0 %v804
    %2175 = vmatpush1.bf16.msra.mxu0 %v803
    %2176 = vmatprep.subr.bf16.mxu0 %v808
    %2177 = vmatpush1.bf16.msra.mxu0 %v807
    %2178 = vmatprep.subr.bf16.mxu0 %v812
    %2179 = vmatpush1.bf16.msra.mxu0 %v811
    %2180 = vmatprep.subr.bf16.mxu0 %v816
    %2181 = vmatpush1.bf16.msra.mxu0 %v815
    %2182 = vmatprep.subr.bf16.mxu0 %v820
    %2183 = vmatpush1.bf16.msra.mxu0 %v819
    %2184 = vmatprep.subr.bf16.mxu0 %v824
    %2185 = vmatpush1.bf16.msra.mxu0 %v823
    %2186 = vmatprep.subr.bf16.mxu0 0
    %2187 = vmatpush1.bf16.msra.mxu0 0
    %2188 = vmatprep.subr.bf16.mxu0 0
    %2189 = vmatpush1.bf16.msra.mxu0 0
    %2190 = vmatprep.subr.bf16.mxu0 0
    %2191 = vmatpush1.bf16.msra.mxu0 0
    %2192 = vmatprep.subr.bf16.mxu0 0
    %2193 = vmatpush1.bf16.msra.mxu0 0
    %2194 = vmatprep.subr.bf16.mxu0 0
    %2195 = vmatpush1.bf16.msra.mxu0 0
    %2196 = vmatprep.subr.bf16.mxu0 0
    %2197 = vmatpush1.bf16.msra.mxu0 0
    %2198 = vmatprep.subr.bf16.mxu0 0
    %2199 = vmatpush1.bf16.msra.mxu0 0
    %2200 = vmatprep.subr.bf16.mxu0 0
    %2201 = vmatpush1.bf16.msra.mxu0 0
    %2202 = vmatprep.mubr.bf16.mxu0 0
    %2203 = vmatmul.mubr.bf16.gmra.mrb[0].mxu0 %v2045
    %v2204 = vpop.f32.mrb[0].mxu0
    %v2205 = vadd.f32 %v2123, %v2204
    %v2206 = vpop.f32.mrb[0].mxu0
    %v2207 = vadd.f32 %v2125, %v2206
    %v2208 = vpop.f32.mrb[0].mxu0
    %v2209 = vpop.f32.mrb[0].mxu0
    %2210 = vdwg.mxu0
    %v2215 = vrot.slane %v2164, 2
    %v2216 = vrot.slane %v2166, 2
    %v2217 = vrot.slane %v2205, 2
    %v2218 = vrot.slane %v2207, 2
    %v2223 = vadd.f32 %v362, %v2215
    %v2224 = vadd.f32 %v363, %v2216
    %v2225 = vadd.f32 %v364, %v2217
    %v2226 = vadd.f32 %v365, %v2218
    %v2227 = vxor.u32 %v2223, 2147483648
    %v2228 = vxor.u32 %v2224, 2147483648
    %v2229 = vxor.u32 %v2225, 2147483648
    %v2230 = vmul.f32 %v2227, 1.442695
    %v2231 = vpow.pop %v2230
    %v2232 = vmul.f32 %v2228, 1.442695
    %v2233 = vpow.pop %v2232
    %v2234 = vmul.f32 %v2229, 1.442695
    %v2235 = vpow.pop %v2234
    %v2236 = vadd.f32 %v2231, 1.0
    %v2237 = vadd.f32 %v2233, 1.0
    %v2238 = vadd.f32 %v2235, 1.0
    %v2239 = vrcp.pop %v2236
    %v2240 = vmul.f32 1.0, %v2239
    %v2241 = vrcp.pop %v2237
    %v2242 = vmul.f32 1.0, %v2241
    %v2243 = vrcp.pop %v2238
    %v2244 = vmul.f32 1.0, %v2243
    %v2245 = vtanh.pop %v2226
    %v2247 = vrot.slane %v2036, 6
    %v2249 = vmul.f32 %v2242, %v2247
    %v2250 = vmul.f32 %v2240, %v2245
    %v2251 = vadd.f32 %v2249, %v2250
    %v2252 = vtanh.pop %v2251
    %v2253 = vmul.f32 %v2244, %v2252
    %v2255 = vrot.slane %v2253, 6
    %v2257 = vmax.f32 %v2042, %v2255
    %v2258 = vld [vmem:[%s5] sm:$0xff]
    %v2259 = vld [vmem:[%s5 + $0x8] sm:$0xff]
    %v2260 = vld [vmem:[%s5 + $0x10] sm:$0xff]
    %v2261 = vld [vmem:[%s5 + $0x18] sm:$0xff]
    %v2262 = vld [vmem:[%s5 + $0x20] sm:$0xff]
    %v2263 = vld [vmem:[%s5 + $0x28] sm:$0xff]
    %v2264 = vld [vmem:[%s5 + $0x30] sm:$0xff]
    %v2265 = vld [vmem:[%s5 + $0x38] sm:$0xff]
    %v2266 = vld [vmem:[%s5 + $0x40] sm:$0xff]
    %v2267 = vld [vmem:[%s5 + $0x48] sm:$0xff]
    %v2268 = vld [vmem:[%s5 + $0x50] sm:$0xff]
    %v2269 = vld [vmem:[%s5 + $0x58] sm:$0xff]
    %v2270 = vld [vmem:[%s5 + $0x60] sm:$0xff]
    %v2271 = vld [vmem:[%s5 + $0x68] sm:$0xff]
    %v2272 = vld [vmem:[%s5 + $0x70] sm:$0xff]
    %v2273 = vld [vmem:[%s5 + $0x78] sm:$0xff]
    %v2274 = vld [vmem:[%s6] sm:$0x1]
    %v2276 = vlaneseq
    %v2277 = vshrl.u32 %v2276, 7
    %v2278 = vsub.s32 0, %v2277
    %v2279 = vrot.slane %v2274, %v2278
    %2281 = vmatprep.subr.mxu0 0.0
    %2282 = vmatpush1.msra.mxu0 %v2258
    %2283 = vmatprep.subr.mxu0 0.0
    %2284 = vmatpush1.msra.mxu0 %v2259
    %2285 = vmatprep.subr.mxu0 0.0
    %2286 = vmatpush1.msra.mxu0 %v2260
    %2287 = vmatprep.subr.mxu0 0.0
    %2288 = vmatpush1.msra.mxu0 %v2261
    %2289 = vmatprep.subr.mxu0 0.0
    %2290 = vmatpush1.msra.mxu0 %v2262
    %2291 = vmatprep.subr.mxu0 0.0
    %2292 = vmatpush1.msra.mxu0 %v2263
    %2293 = vmatprep.subr.mxu0 0.0
    %2294 = vmatpush1.msra.mxu0 %v2264
    %2295 = vmatprep.subr.mxu0 0.0
    %2296 = vmatpush1.msra.mxu0 %v2265
    %2297 = vmatprep.subr.mxu0 0.0
    %2298 = vmatpush1.msra.mxu0 %v2266
    %2299 = vmatprep.subr.mxu0 0.0
    %2300 = vmatpush1.msra.mxu0 %v2267
    %2301 = vmatprep.subr.mxu0 0.0
    %2302 = vmatpush1.msra.mxu0 %v2268
    %2303 = vmatprep.subr.mxu0 0.0
    %2304 = vmatpush1.msra.mxu0 %v2269
    %2305 = vmatprep.subr.mxu0 0.0
    %2306 = vmatpush1.msra.mxu0 %v2270
    %2307 = vmatprep.subr.mxu0 0.0
    %2308 = vmatpush1.msra.mxu0 %v2271
    %2309 = vmatprep.subr.mxu0 0.0
    %2310 = vmatpush1.msra.mxu0 %v2272
    %2311 = vmatprep.subr.mxu0 0.0
    %2312 = vmatpush1.msra.mxu0 %v2273
    %2313 = vmatprep.subr.mxu0 0.0
    %2314 = vmatpush1.msra.mxu0 0.0
    %2315 = vmatprep.subr.mxu0 0.0
    %2316 = vmatpush1.msra.mxu0 0.0
    %2317 = vmatprep.subr.mxu0 0.0
    %2318 = vmatpush1.msra.mxu0 0.0
    %2319 = vmatprep.subr.mxu0 0.0
    %2320 = vmatpush1.msra.mxu0 0.0
    %2321 = vmatprep.subr.mxu0 0.0
    %2322 = vmatpush1.msra.mxu0 0.0
    %2323 = vmatprep.subr.mxu0 0.0
    %2324 = vmatpush1.msra.mxu0 0.0
    %2325 = vmatprep.subr.mxu0 0.0
    %2326 = vmatpush1.msra.mxu0 0.0
    %2327 = vmatprep.subr.mxu0 0.0
    %2328 = vmatpush1.msra.mxu0 0.0
    %2329 = vmatprep.subr.mxu0 0.0
    %2330 = vmatpush1.msra.mxu0 0.0
    %2331 = vmatprep.subr.mxu0 0.0
    %2332 = vmatpush1.msra.mxu0 0.0
    %2333 = vmatprep.subr.mxu0 0.0
    %2334 = vmatpush1.msra.mxu0 0.0
    %2335 = vmatprep.subr.mxu0 0.0
    %2336 = vmatpush1.msra.mxu0 0.0
    %2337 = vmatprep.subr.mxu0 0.0
    %2338 = vmatpush1.msra.mxu0 0.0
    %2339 = vmatprep.subr.mxu0 0.0
    %2340 = vmatpush1.msra.mxu0 0.0
    %2341 = vmatprep.subr.mxu0 0.0
    %2342 = vmatpush1.msra.mxu0 0.0
    %2343 = vmatprep.subr.mxu0 0.0
    %2344 = vmatpush1.msra.mxu0 0.0
    %2345 = vmatprep.mubr.f32.mxu0 0.0
    %2346 = vmatmul.mubr.f32.gmra.mrb[0].mxu0 %v2257
    %v2347 = vpop.f32.mrb[0].mxu0
    %v2348 = vadd.f32 %v2279, %v2347
    %v2349 = vpop.f32.mrb[0].mxu0
    %2350 = vdwg.mxu0
    %v2351 = vmax.f32 %v2348, 0.0
    %v2352 = vld [vmem:[%s7] sm:$0xff]
    %v2353 = vld [vmem:[%s7 + $0x8] sm:$0xff]
    %v2354 = vld [vmem:[%s7 + $0x10] sm:$0xff]
    %v2355 = vld [vmem:[%s7 + $0x18] sm:$0xff]
    %v2356 = vld [vmem:[%s8] sm:$0x1]
    %v2358 = vlaneseq
    %v2359 = vshrl.u32 %v2358, 7
    %v2360 = vsub.s32 0, %v2359
    %v2361 = vrot.slane %v2356, %v2360
    %v2364 = vsel %vm117, %v2351, 0
    %2366 = vmatprep.subr.mxu0 0.0
    %2367 = vmatpush1.msra.mxu0 %v2352
    %2368 = vmatprep.subr.mxu0 0.0
    %2369 = vmatpush1.msra.mxu0 %v2353
    %2370 = vmatprep.subr.mxu0 0.0
    %2371 = vmatpush1.msra.mxu0 %v2354
    %2372 = vmatprep.subr.mxu0 0.0
    %2373 = vmatpush1.msra.mxu0 %v2355
    %2374 = vmatprep.subr.mxu0 0.0
    %2375 = vmatpush1.msra.mxu0 0.0
    %2376 = vmatprep.subr.mxu0 0.0
    %2377 = vmatpush1.msra.mxu0 0.0
    %2378 = vmatprep.subr.mxu0 0.0
    %2379 = vmatpush1.msra.mxu0 0.0
    %2380 = vmatprep.subr.mxu0 0.0
    %2381 = vmatpush1.msra.mxu0 0.0
    %2382 = vmatprep.subr.mxu0 0.0
    %2383 = vmatpush1.msra.mxu0 0.0
    %2384 = vmatprep.subr.mxu0 0.0
    %2385 = vmatpush1.msra.mxu0 0.0
    %2386 = vmatprep.subr.mxu0 0.0
    %2387 = vmatpush1.msra.mxu0 0.0
    %2388 = vmatprep.subr.mxu0 0.0
    %2389 = vmatpush1.msra.mxu0 0.0
    %2390 = vmatprep.subr.mxu0 0.0
    %2391 = vmatpush1.msra.mxu0 0.0
    %2392 = vmatprep.subr.mxu0 0.0
    %2393 = vmatpush1.msra.mxu0 0.0
    %2394 = vmatprep.subr.mxu0 0.0
    %2395 = vmatpush1.msra.mxu0 0.0
    %2396 = vmatprep.subr.mxu0 0.0
    %2397 = vmatpush1.msra.mxu0 0.0
    %2398 = vmatprep.subr.mxu0 0.0
    %2399 = vmatpush1.msra.mxu0 0.0
    %2400 = vmatprep.subr.mxu0 0.0
    %2401 = vmatpush1.msra.mxu0 0.0
    %2402 = vmatprep.subr.mxu0 0.0
    %2403 = vmatpush1.msra.mxu0 0.0
    %2404 = vmatprep.subr.mxu0 0.0
    %2405 = vmatpush1.msra.mxu0 0.0
    %2406 = vmatprep.subr.mxu0 0.0
    %2407 = vmatpush1.msra.mxu0 0.0
    %2408 = vmatprep.subr.mxu0 0.0
    %2409 = vmatpush1.msra.mxu0 0.0
    %2410 = vmatprep.subr.mxu0 0.0
    %2411 = vmatpush1.msra.mxu0 0.0
    %2412 = vmatprep.subr.mxu0 0.0
    %2413 = vmatpush1.msra.mxu0 0.0
    %2414 = vmatprep.subr.mxu0 0.0
    %2415 = vmatpush1.msra.mxu0 0.0
    %2416 = vmatprep.subr.mxu0 0.0
    %2417 = vmatpush1.msra.mxu0 0.0
    %2418 = vmatprep.subr.mxu0 0.0
    %2419 = vmatpush1.msra.mxu0 0.0
    %2420 = vmatprep.subr.mxu0 0.0
    %2421 = vmatpush1.msra.mxu0 0.0
    %2422 = vmatprep.subr.mxu0 0.0
    %2423 = vmatpush1.msra.mxu0 0.0
    %2424 = vmatprep.subr.mxu0 0.0
    %2425 = vmatpush1.msra.mxu0 0.0
    %2426 = vmatprep.subr.mxu0 0.0
    %2427 = vmatpush1.msra.mxu0 0.0
    %2428 = vmatprep.subr.mxu0 0.0
    %2429 = vmatpush1.msra.mxu0 0.0
    %2430 = vmatprep.mubr.f32.mxu0 0.0
    %2431 = vmatmul.mubr.f32.gmra.mrb[0].mxu0 %v2364
    %v2432 = vpop.f32.mrb[0].mxu0
    %v2433 = vadd.f32 %v2361, %v2432
    %v2434 = vpop.f32.mrb[0].mxu0
    %2435 = vdwg.mxu0
    %vm2436 = vcmask 58368
    %v2437 = vsel %vm2436, %v2433, -inf
    %2438 = vmax.xlane.f32.xlu0 %v2437
    %v2439 = vpop.xlane.xlu0 %2438
    %v2440 = vsub.f32 %v2433, %v2439
    %v2441 = vmul.f32 %v2440, 1.442695
    %v2442 = vpow.pop %v2441
    %v2443 = vsel %vm2436, %v2442, 0.0
    %2444 = vadd.xlane.f32.xlu0 %v2443
    %v2445 = vpop.xlane.xlu0 %2444
    %v2446 = vrcp.pop %v2445
    %v2447 = vmul.f32 %v2442, %v2446
    %2448 = vst.msk [vmem:[#allocation7] sm:$0x3] %vm2436, %v2447
    // Predicated region
    $region46: #{tpu_custom_call.1} parent=1 // pred_check
      _
    $region47: #{tpu_custom_call.1} parent=1 // pred_check_branch
      %2450 = sbr.rel (0) target = $region49
    $region48: #{tpu_custom_call.1} parent=1 // pred_region
      %s2452 = ssub.s32 32, 32
      %2453 = vsyncadd [#allocation4], %s2452
      %s2455 = sshll.u32 [#allocation7], 4
      %s2456 = int_to_ptr.vmem [resolvable:$true] %s2455
      %2458 = dma.vmem_to_hbm [thread:$0]  %s2456, 32, %s9, [#allocation4]
    $region49: #{tpu_custom_call.1} parent=1 // pred_fallthru
      _
    // Predicated region
    $region50: #{tpu_custom_call.1} parent=1 // pred_check
      _
    $region51: #{tpu_custom_call.1} parent=1 // pred_check_branch
      %2460 = sbr.rel (0) target = $region53
    $region52: #{tpu_custom_call.1} parent=1 // pred_region
      %2461 = dma.done [#allocation4], 32
    $region53: #{tpu_custom_call.1} parent=1 // pred_fallthru
      _
    %2462 = vsyncpa [#allocation3], 1
    %2463 = vsyncpa [#allocation6], 1
    %2464 = vsyncpa [#allocation4], 1

</llo_original>
